<compile_context>
chip_gen: v5e
topology: v5e:2x2
jax: 0.10.0
libtpu: 0.0.40
codegen_flags: <defaults>
</compile_context>

<pallas_src>
import functools

import jax
import jax.numpy as jnp
from jax.experimental import pallas as pl
from jax.experimental.pallas import tpu as pltpu

IN_CHANNELS = 1
OUT_CHANNELS = 15
K = 3                      # ConvTranspose2d kernel size
COUT_PAD = 16              # per-branch channel count padded to a sublane multiple
NTAPS = K * K + 1          # 9 conv taps + 1 "ones" row (bias folded into the matmul)


def _round_up(a, b):
    return (a + b - 1) // b * b


def _quad_deconv_kernel(w_ref, p_ref, o_ref):
    # w_ref: (3*COUT_PAD, NTAPS)  rows [0:16)=r, [16:32)=g, [32:48)=b; col 9 = bias
    # p_ref: (NTAPS, T)           rows 0..8 = im2col taps of padded x, row 9 = ones
    # o_ref: (COUT_PAD, T)        lane-dense output slab (padded channel 15 is 0)
    w = w_ref[...]
    p = p_ref[...]

    # r & g branches in one MXU matmul (biases folded in via the ones row).
    acc_rg = jnp.dot(w[0:2 * COUT_PAD, :], p,
                     preferred_element_type=jnp.float32,
                     precision=jax.lax.Precision.HIGHEST)
    # b branch: taps of x^2 == (taps of x)^2 since the padding is zero; the ones
    # row squared is still ones, so the bias fold also works for this branch.
    acc_b = jnp.dot(w[2 * COUT_PAD:3 * COUT_PAD, :], p * p,
                    preferred_element_type=jnp.float32,
                    precision=jax.lax.Precision.HIGHEST)

    r = acc_rg[0:COUT_PAD, :]
    g = acc_rg[COUT_PAD:2 * COUT_PAD, :]
    o_ref[...] = (r * g + acc_b).astype(o_ref.dtype)


@functools.partial(jax.jit, static_argnames=("pixel_block",))
def quad_deconv(x, w_r, w_g, w_b, b_r, b_g, b_b, *, pixel_block=8192):
    """x: (N, 1, H, W) f32; w_*: (1, Cout, 3, 3) ConvTranspose2d weights; b_*: (Cout,).
    Returns (N, Cout, H+2, W+2)."""
    n, cin, h, w = x.shape
    assert cin == IN_CHANNELS
    cout = w_r.shape[1]
    hout, wout = h + K - 1, w + K - 1
    hw = hout * wout

    # ---- wrapper-side layout plumbing: pad + im2col (lane-dense pixel axis) ----
    xpad = jnp.pad(x[:, 0].astype(jnp.float32),
                   ((0, 0), (K - 1, K - 1), (K - 1, K - 1)))          # (N, H+4, W+4)
    taps = [xpad[:, di:di + hout, dj:dj + wout]
            for di in range(K) for dj in range(K)]                    # 9 x (N,Ho,Wo)
    ones = jnp.ones((n, 1, hout, wout), jnp.float32)
    patches = jnp.concatenate([jnp.stack(taps, axis=1), ones], axis=1)  # (N,10,Ho,Wo)
    patches = patches.reshape(n, NTAPS, hw)                            # (N,10,HW)

    # pixel-chunk size: multiple of 128 (unmasked lane-dense stores); make sure
    # the grid has >= 2 steps when possible so both megacore TCs get work.
    hw128 = _round_up(hw, 128)
    t = min(pixel_block, hw128)
    if n * (hw128 // t) < 2 and hw128 >= 256:
        t = _round_up(hw128 // 2, 128)
    hw_pad = _round_up(hw, t)
    n_chunks = hw_pad // t
    patches = jnp.pad(patches, ((0, 0), (0, 0), (0, hw_pad - hw)))     # (N,10,HWp)

    # ---- weights: flip 3x3 spatially, flatten taps, append bias col, pad Cout->16
    def prep(wt, b):
        w9 = wt[0, :, ::-1, ::-1].reshape(cout, K * K).astype(jnp.float32)
        wb = jnp.concatenate([w9, b.reshape(cout, 1).astype(jnp.float32)], axis=1)
        return jnp.pad(wb, ((0, COUT_PAD - cout), (0, 0)))             # (16, 10)

    w_all = jnp.concatenate([prep(w_r, b_r), prep(w_g, b_g), prep(w_b, b_b)],
                            axis=0)                                     # (48, 10)

    pixels = n * hw_pad
    flops = (2 * 3 * COUT_PAD * NTAPS + 3 * COUT_PAD + NTAPS) * pixels
    bytes_accessed = 4 * ((NTAPS + COUT_PAD) * pixels + 3 * COUT_PAD * NTAPS)

    out_flat = pl.pallas_call(
        _quad_deconv_kernel,
        out_shape=jax.ShapeDtypeStruct((n, COUT_PAD, hw_pad), jnp.float32),
        grid_spec=pltpu.PrefetchScalarGridSpec(
            num_scalar_prefetch=0,
            grid=(n, n_chunks),
            in_specs=[
                # constant block index -> weights stay resident across the grid
                pl.BlockSpec((3 * COUT_PAD, NTAPS), lambda b, i: (0, 0)),
                pl.BlockSpec((None, NTAPS, t), lambda b, i: (b, 0, i)),
            ],
            out_specs=pl.BlockSpec((None, COUT_PAD, t), lambda b, i: (b, 0, i)),
        ),
        compiler_params=pltpu.CompilerParams(
            dimension_semantics=("parallel", "parallel"),
            vmem_limit_bytes=32 * 1024 * 1024,
        ),
        cost_estimate=pl.CostEstimate(flops=flops, transcendentals=0,
                                      bytes_accessed=bytes_accessed),
    )(w_all, patches)

    # batch-major output -> only crop channel/pixel padding and reshape (no transpose)
    return out_flat[:, :cout, :hw].reshape(n, cout, hout, wout)


def _deconv_ref(x, wt, b):
    """Pure-JAX reference for ConvTranspose2d(stride=1, pad=0) in scatter form.
    x: (N, 1, H, W); wt: (1, Cout, 3, 3); b: (Cout,)."""
    n, _, h, w = x.shape
    cout = wt.shape[1]
    out = jnp.zeros((n, cout, h + K - 1, w + K - 1), jnp.float32)
    for di in range(K):
        for dj in range(K):
            out = out.at[:, :, di:di + h, dj:dj + w].add(
                x * wt[0, :, di, dj][None, :, None, None])
    return out + b[None, :, None, None]


if __name__ == "__main__":
    key = jax.random.PRNGKey(0)
    k_x, k_r, k_g, k_b = jax.random.split(key, 4)

    N, H, W = 2, 16, 16
    x = jax.random.normal(k_x, (N, IN_CHANNELS, H, W), dtype=jnp.float32)

    # Deterministic parameter init mirroring the module's __init__:
    #  - deconv_r.weight ~ truncated normal (|z| < 2) * 0.1
    #  - deconv_g / deconv_b weights: default-style uniform init
    #  - all biases = -0.02
    wshape = (IN_CHANNELS, OUT_CHANNELS, K, K)
    w_r = 0.1 * jax.random.truncated_normal(k_r, -2.0, 2.0, wshape, dtype=jnp.float32)
    bound = 1.0 / 3.0  # ~ 1/sqrt(fan_in) with fan_in = 9
    w_g = jax.random.uniform(k_g, wshape, jnp.float32, -bound, bound)
    w_b = jax.random.uniform(k_b, wshape, jnp.float32, -bound, bound)
    b_r = jnp.full((OUT_CHANNELS,), -0.02, jnp.float32)
    b_g = jnp.full((OUT_CHANNELS,), -0.02, jnp.float32)
    b_b = jnp.full((OUT_CHANNELS,), -0.02, jnp.float32)

    out = quad_deconv(x, w_r, w_g, w_b, b_r, b_g, b_b)
    out = jax.block_until_ready(out)

    # Independent reference (scatter-form transposed conv).
    ref = (_deconv_ref(x, w_r, b_r) * _deconv_ref(x, w_g, b_g)
           + _deconv_ref(x * x, w_b, b_b))

    assert out.shape == (N, OUT_CHANNELS, H + 2, W + 2), out.shape
    err = float(jnp.max(jnp.abs(out - ref)))
    assert jnp.allclose(out, ref, atol=1e-4, rtol=1e-4), err
    print("KERNEL_OK")
</pallas_src>

<mosaic_0001>
module attributes {stable_mosaic.version = 11 : i64} {
  func.func @_quad_deconv_kernel(%arg0: i32, %arg1: i32, %arg2: memref<48x10xf32, #tpu.memory_space<vmem>>, %arg3: memref<1x10x384xf32, #tpu.memory_space<vmem>>, %arg4: memref<1x16x384xf32, #tpu.memory_space<vmem>>) attributes {dimension_semantics = [#tpu.dimension_semantics<parallel>, #tpu.dimension_semantics<parallel>], iteration_bounds = array<i64: 2, 1>, scalar_prefetch = 0 : i64, scratch_operands = 0 : i64, tpu.core_type = #tpu.core_type<tc>, window_params = [{pipeline_mode = #tpu.pipeline_mode<synchronous>, transform_indices = @transform_0, window_bounds = array<i64: 48, 10>}, {transform_indices = @transform_1, window_bounds = array<i64: 1, 10, 384>}, {transform_indices = @transform_2, window_bounds = array<i64: 1, 16, 384>}]} {
    %c0 = arith.constant 0 : index
    %c0_0 = arith.constant 0 : index
    %0 = vector.load %arg2[%c0, %c0_0] : memref<48x10xf32, #tpu.memory_space<vmem>>, vector<48x10xf32>
    %c0_1 = arith.constant 0 : index
    %c0_2 = arith.constant 0 : index
    %c0_3 = arith.constant 0 : index
    %1 = vector.load %arg3[%c0_1, %c0_2, %c0_3] : memref<1x10x384xf32, #tpu.memory_space<vmem>>, vector<1x10x384xf32>
    %2 = vector.shape_cast %1 : vector<1x10x384xf32> to vector<10x384xf32>
    %3 = vector.extract_strided_slice %0 {offsets = [0, 0], sizes = [32, 10], strides = [1, 1]} : vector<48x10xf32> to vector<32x10xf32>
    %cst = arith.constant dense<0.000000e+00> : vector<32x384xf32>
    %4 = tpu.matmul %3, %2, %cst {dimension_numbers = #tpu.dot_dimension_numbers<[1], [0], [0], [1], [0, 0, 1, 1], [], []>, precision = #tpu.contract_precision<fp32>} : vector<32x10xf32>, vector<10x384xf32>, vector<32x384xf32> -> vector<32x384xf32>
    %5 = vector.extract_strided_slice %0 {offsets = [32, 0], sizes = [16, 10], strides = [1, 1]} : vector<48x10xf32> to vector<16x10xf32>
    %6 = arith.mulf %2, %2 : vector<10x384xf32>
    %cst_4 = arith.constant dense<0.000000e+00> : vector<16x384xf32>
    %7 = tpu.matmul %5, %6, %cst_4 {dimension_numbers = #tpu.dot_dimension_numbers<[1], [0], [0], [1], [0, 0, 1, 1], [], []>, precision = #tpu.contract_precision<fp32>} : vector<16x10xf32>, vector<10x384xf32>, vector<16x384xf32> -> vector<16x384xf32>
    %8 = vector.extract_strided_slice %4 {offsets = [0, 0], sizes = [16, 384], strides = [1, 1]} : vector<32x384xf32> to vector<16x384xf32>
    %9 = vector.extract_strided_slice %4 {offsets = [16, 0], sizes = [16, 384], strides = [1, 1]} : vector<32x384xf32> to vector<16x384xf32>
    %10 = arith.mulf %8, %9 : vector<16x384xf32>
    %11 = arith.addf %10, %7 : vector<16x384xf32>
    %c0_5 = arith.constant 0 : index
    %c0_6 = arith.constant 0 : index
    %c0_7 = arith.constant 0 : index
    %12 = vector.load %arg4[%c0_5, %c0_6, %c0_7] : memref<1x16x384xf32, #tpu.memory_space<vmem>>, vector<1x16x384xf32>
    %13 = vector.shape_cast %12 : vector<1x16x384xf32> to vector<16x384xf32>
    %14 = vector.shape_cast %11 : vector<16x384xf32> to vector<1x16x384xf32>
    tpu.vector_store %arg4[%c0_5, %c0_6, %c0_7], %14 {strides = array<i32>} : memref<1x16x384xf32, #tpu.memory_space<vmem>>, vector<1x16x384xf32>,
    return
  }
  func.func @transform_0(%arg0: i32, %arg1: i32) -> (i32, i32) {
    %c0_i32 = arith.constant 0 : i32
    %c0_i32_0 = arith.constant 0 : i32
    %c0_i32_1 = arith.constant 0 : i32
    return %c0_i32, %c0_i32_0 : i32, i32
  }
  func.func @transform_1(%arg0: i32, %arg1: i32) -> (i32, i32, i32) {
    %c0_i32 = arith.constant 0 : i32
    %c0_i32_0 = arith.constant 0 : i32
    return %arg0, %c0_i32, %arg1 : i32, i32, i32
  }
  func.func @transform_2(%arg0: i32, %arg1: i32) -> (i32, i32, i32) {
    %c0_i32 = arith.constant 0 : i32
    %c0_i32_0 = arith.constant 0 : i32
    return %arg0, %c0_i32, %arg1 : i32, i32, i32
  }
}

</mosaic_0001>

<llo_original>
// kernel: squeeze.5
$region0: #{squeeze.5}
  %s0 = inlined_call_operand.vmem [shape: f32[15,3,3], index: 0, kind: input, shape index: {}]
  %s1 = inlined_call_operand.vmem [shape: f32[15,9], index: 1, kind: output, shape index: {}]
  $region1: #{squeeze.5} parent=0
    #allocation0 [shape = 'u8[12288]{0}', space=vmem, size = 0x3000, scoped, tag = 'scoped mem for input reshape']
    %s3 = ssub.s32 16, 1
    %s4 = scalar_lea.vmem %s0, 8
    %v5 = vld [vmem:[%s4] sm:%s3]
    %s6 = scalar_lea.vmem [#allocation0], 16
    %7 = vst [vmem:[%s6] sm:%s3] %v5
    %s8 = scalar_lea.vmem %s0, 4
    %v9 = vld [vmem:[%s8] sm:%s3]
    %s10 = scalar_lea.vmem [#allocation0], 8
    %11 = vst [vmem:[%s10] sm:%s3] %v9
    %v12 = vld [vmem:[%s0] sm:%s3]
    %13 = vst [vmem:[#allocation0] sm:%s3] %v12
    %v14 = vld [vmem:[#allocation0] sm:$0x7]
    %vm15 = vcmask 121856
    %16 = vst.msk [vmem:[%s1] sm:$0x7] %vm15, %v14
    %s17 = scalar_lea.vmem [#allocation0], 8
    %v18 = vld [vmem:[%s17] sm:$0x7]
    %vm19 = vcmask 121856
    %s20 = scalar_lea.vmem %s1, 3
    %21 = vst.msk [vmem:[%s20] sm:$0x7] %vm19, %v18
    %s22 = scalar_lea.vmem [#allocation0], 16
    %v23 = vld [vmem:[%s22] sm:$0x7]
    %vm24 = vcmask 121856
    %s25 = scalar_lea.vmem %s1, 6
    %26 = vst.msk [vmem:[%s25] sm:$0x7] %vm24, %v23

// kernel: quad_deconv.1
$region0: #{quad_deconv.1}
  #allocation0 [shape = 'u32[]', space=smem, size = 0x4, offset = 0x4, fixed_abs, tag = 'smem constant byte address 0x4 - core index']
  #allocation1 [shape = 'u32[72,128]{1,0:T(1,128)}', space=vmem, size = 0x9000, scoped, tag = 'internal scratch']
  %s0 = inlined_call_operand.vmem [shape: f32[48,10], index: 0, kind: input, shape index: {}]
  %s1 = inlined_call_operand.vmem [shape: f32[2,10,384], index: 1, kind: input, shape index: {}]
  %s2 = inlined_call_operand.vmem [shape: f32[2,16,384], index: 2, kind: output, shape index: {}]
  %s3 = sld [smem:[#allocation0]]
  $region41: #{quad_deconv.1} parent=0
    _
  %s5 = ssub.s32 1, %s3
  %s6 = scalar_select 0, %s5, %s3
  loop: start=0, step=1, limit=4
  $region2: #{quad_deconv.1} parent=0 // loop_pre_header
    _
  $region3: #{quad_deconv.1} parent=0 // loop_header
    %s8 = sphi 0, %s12
    %p9 = scmp.ge.s32.totalorder %s8, 4
    %s15 = sphi 0, %s27
    %s16 = sphi 0, %s23
    %s17 = sphi 0, %s15
    %s18 = sphi 0, %s16
    %s19 = sphi 0, %s17
    %s20 = sphi 0, %s18
    %s28 = sphi 0, %s28
    %s30 = sphi 0, %s28
    %s31 = sphi 0, %s30
    %s45 = sphi 0, %s31
    %s53 = sphi 0, %s55
    %s56 = sphi 0, %s53
    %s57 = sphi 0, %s56
    %s73 = sphi 0, %s57
    %s81 = sphi 0, %s83
    %s84 = sphi 0, %s81
    %s85 = sphi 0, %s84
    %s101 = sphi 0, %s85
  $region4: #{quad_deconv.1} parent=0 // loop_header_branch
    %11 = sbr.rel (%p9) target = $region8
  $region5: #{quad_deconv.1} parent=0 // loop_body
    %s13 = ssub.s32 %s8, 1
    %s14 = ssub.s32 %s8, 2
    %s21 = sadd.s32 1, %s16
    %p22 = scmp.ge.s32.totalorder %s21, 1
    %s23 = scalar_select %p22, 0, %s21
    %s24 = sadd.s32 1, %s15
    %s25 = scalar_select %p22, %s24, %s15
    %p26 = scmp.ge.s32.totalorder %s25, 2
    %s27 = scalar_select %p26, 0, %s25
    %s29 = sadd.s32 %s28, 1
    %p32 = scmp.eq.s32.totalorder %s8, 1
    %p33 = scmp.ne.s32.totalorder %s28, %s30
    %p34 = scmp.eq.s32.totalorder %s8, 0
    %p35 = por %p33, %p34
    %p36 = scmp.ne.s32.totalorder %s28, %s30
    %p37 = scmp.eq.s32.totalorder %s13, 1
    %p38 = por %p36, %p37
    %p39 = scmp.ne.s32.totalorder %s30, %s31
    %p40 = scmp.eq.s32.totalorder %s13, 0
    %p41 = por %p39, %p40
    %p42 = scmp.ne.s32.totalorder %s30, %s31
    %p43 = scmp.eq.s32.totalorder %s14, 1
    %p44 = por %p42, %p43
    %p46 = scmp.ne.s32.totalorder %s31, %s45
    %p47 = scmp.eq.s32.totalorder %s14, 0
    %p48 = por %p46, %p47
    %s49 = ssub.s32 %s15, %s27
    %s50 = ssub.s32 %s16, %s23
    %s51 = sor.u32 %s49, %s50
    %p52 = scmp.eq.s32.totalorder %s51, 0
    %s54 = sadd.s32 %s53, 1
    %s55 = scalar_select %p52, %s53, %s54
    %p58 = pneg %p52
    %p59 = scmp.eq.s32.totalorder %s8, 1
    %p60 = por %p58, %p59
    %p61 = scmp.ne.s32.totalorder %s53, %s56
    %p62 = scmp.eq.s32.totalorder %s8, 0
    %p63 = por %p61, %p62
    %p64 = scmp.ne.s32.totalorder %s53, %s56
    %p65 = scmp.eq.s32.totalorder %s13, 1
    %p66 = por %p64, %p65
    %p67 = scmp.ne.s32.totalorder %s56, %s57
    %p68 = scmp.eq.s32.totalorder %s13, 0
    %p69 = por %p67, %p68
    %p70 = scmp.ne.s32.totalorder %s56, %s57
    %p71 = scmp.eq.s32.totalorder %s14, 1
    %p72 = por %p70, %p71
    %p74 = scmp.ne.s32.totalorder %s57, %s73
    %p75 = scmp.eq.s32.totalorder %s14, 0
    %p76 = por %p74, %p75
    %s77 = ssub.s32 %s15, %s27
    %s78 = ssub.s32 %s16, %s23
    %s79 = sor.u32 %s77, %s78
    %p80 = scmp.eq.s32.totalorder %s79, 0
    %s82 = sadd.s32 %s81, 1
    %s83 = scalar_select %p80, %s81, %s82
    %p86 = pneg %p80
    %p87 = scmp.eq.s32.totalorder %s8, 1
    %p88 = por %p86, %p87
    %p89 = scmp.ne.s32.totalorder %s81, %s84
    %p90 = scmp.eq.s32.totalorder %s8, 0
    %p91 = por %p89, %p90
    %p92 = scmp.ne.s32.totalorder %s81, %s84
    %p93 = scmp.eq.s32.totalorder %s13, 1
    %p94 = por %p92, %p93
    %p95 = scmp.ne.s32.totalorder %s84, %s85
    %p96 = scmp.eq.s32.totalorder %s13, 0
    %p97 = por %p95, %p96
    %p98 = scmp.ne.s32.totalorder %s84, %s85
    %p99 = scmp.eq.s32.totalorder %s14, 1
    %p100 = por %p98, %p99
    %p102 = scmp.ne.s32.totalorder %s85, %s101
    %p103 = scmp.eq.s32.totalorder %s14, 0
    %p104 = por %p102, %p103
    %p105 = scmp.le.s32.totalorder 1, %s8
    %p106 = scmp.lt.s32.totalorder %s8, 3
    %p107 = pnand %p105, %p106
    %p108 = pneg %p107
    // Predicated region
    $region9: #{quad_deconv.1} parent=5 // pred_check
      _
    $region10: #{quad_deconv.1} parent=5 // pred_check_branch
      %110 = sbr.rel (%p107) target = $region12
    $region11: #{quad_deconv.1} parent=5 // pred_region
      %s111 = ssub.s32 %s8, 1
      // Predicated region
      $region13: #{quad_deconv.1} parent=11 // pred_check
        %p112 = pneg %p41
      $region14: #{quad_deconv.1} parent=11 // pred_check_branch
        %114 = sbr.rel (%p112) target = $region16
      $region15: #{quad_deconv.1} parent=11 // pred_region
        _
      $region16: #{quad_deconv.1} parent=11 // pred_fallthru
        _
    $region12: #{quad_deconv.1} parent=5 // pred_fallthru
      _
    %p115 = scmp.lt.s32.totalorder %s8, 2
    // Predicated region
    $region17: #{quad_deconv.1} parent=5 // pred_check
      %p116 = pneg %p115
    $region18: #{quad_deconv.1} parent=5 // pred_check_branch
      %118 = sbr.rel (%p116) target = $region20
    $region19: #{quad_deconv.1} parent=5 // pred_region
      // Predicated region
      $region21: #{quad_deconv.1} parent=19 // pred_check
        %p119 = pneg %p63
      $region22: #{quad_deconv.1} parent=19 // pred_check_branch
        %121 = sbr.rel (%p119) target = $region24
      $region23: #{quad_deconv.1} parent=19 // pred_region
        %s122 = smul.u32 3, %s16
        %p123 = scmp.lt.s32.totalorder %s15, 1
        %s124 = scalar_select %p123, %s15, 1
        %p125 = scmp.lt.s32.totalorder %s122, 2
        %s126 = scalar_select %p125, %s122, 2
        %s127 = smul.addr %s124, 6
        %s128 = sadd.s32 %s126, %s127
        %s129 = smul.addr %s128, 8
        %s130 = scalar_lea.vmem %s1, %s129
        %s131 = smul.u32 3, %s16
      $region24: #{quad_deconv.1} parent=19 // pred_fallthru
        _
    $region20: #{quad_deconv.1} parent=5 // pred_fallthru
      _
    %p132 = scmp.le.s32.totalorder 1, %s8
    %p133 = scmp.lt.s32.totalorder %s8, 3
    %p134 = pnand %p132, %p133
    %p135 = pneg %p134
    // Predicated region
    $region25: #{quad_deconv.1} parent=5 // pred_check
      _
    $region26: #{quad_deconv.1} parent=5 // pred_check_branch
      %137 = sbr.rel (%p134) target = $region28
    $region27: #{quad_deconv.1} parent=5 // pred_region
      %s138 = ssub.s32 %s8, 1
      %p139 = pneg %p41
      %p140 = pneg %p38
      %s141 = smul.u32 3, %s18
      %p142 = scmp.lt.s32.totalorder %s17, 1
      %s143 = scalar_select %p142, %s17, 1
      %p144 = scmp.lt.s32.totalorder %s141, 2
      %s145 = scalar_select %p144, %s141, 2
      %s146 = smul.addr %s143, 6
      %s147 = sadd.s32 %s145, %s146
      %s148 = smul.addr %s147, 8
      %s149 = scalar_lea.vmem %s1, %s148
      %p150 = pneg %p69
      %p151 = pneg %p66
      %p152 = pneg %p97
      %p153 = pneg %p94
      %s154 = smul.u32 3, %s18
      %p155 = scmp.lt.s32.totalorder %s17, 1
      %s156 = scalar_select %p155, %s17, 1
      %p157 = scmp.lt.s32.totalorder %s154, 2
      %s158 = scalar_select %p157, %s154, 2
      %s159 = smul.addr %s156, 6
      %s160 = sadd.s32 %s158, %s159
      %s161 = smul.addr %s160, 8
      %s162 = scalar_lea.vmem %s2, %s161
      %s163 = smul.u32 3, %s18
      %p164 = scmp.lt.s32.totalorder %s17, 1
      %s165 = scalar_select %p164, %s17, 1
      %p166 = scmp.lt.s32.totalorder %s163, 2
      %s167 = scalar_select %p166, %s163, 2
      %s168 = smul.addr %s165, 6
      %s169 = sadd.s32 %s167, %s168
      %s170 = smul.addr %s169, 8
      %s171 = scalar_lea.vmem %s1, %s170
      %s172 = smul.u32 3, %s18
      %s173 = smul.u32 3, %s18
      %p174 = scmp.lt.s32.totalorder %s17, 1
      %s175 = scalar_select %p174, %s17, 1
      %p176 = scmp.lt.s32.totalorder %s173, 2
      %s177 = scalar_select %p176, %s173, 2
      %s178 = smul.addr %s175, 6
      %s179 = sadd.s32 %s177, %s178
      %s180 = smul.addr %s179, 8
      %s181 = scalar_lea.vmem %s2, %s180
      %s182 = smul.u32 3, %s18
      %v183 = vld [vmem:[%s0] sm:$0xff]
      %v184 = vld [vmem:[%s0 + $0x8] sm:$0xff]
      %v185 = vld [vmem:[%s0 + $0x10] sm:$0xff]
      %v186 = vld [vmem:[%s0 + $0x18] sm:$0xff]
      %v187 = vld [vmem:[%s0 + $0x20] sm:$0xff]
      %v188 = vld [vmem:[%s0 + $0x28] sm:$0xff]
      %v189 = vld [vmem:[%s171] sm:$0xff]
      %v190 = vld [vmem:[%s171 + $0x8] sm:$0xff]
      %v191 = vld [vmem:[%s171 + $0x10] sm:$0xff]
      %v192 = vld [vmem:[%s171 + $0x18] sm:$0x3]
      %v193 = vld [vmem:[%s171 + $0x20] sm:$0x3]
      %v194 = vld [vmem:[%s171 + $0x28] sm:$0x3]
      %vm195 = vcmask 80896
      %v197 = vsel %vm195, %v183, 0
      %v200 = vsel %vm195, %v184, 0
      %v203 = vsel %vm195, %v185, 0
      %v206 = vsel %vm195, %v186, 0
      %vm208 = vcmask 1041408
      %v210 = vsel %vm208, %v192, 0
      %v213 = vsel %vm208, %v193, 0
      %v216 = vsel %vm208, %v194, 0
      %218 = vmatpush.msra.mxu0 0.0
      %219 = vmatpush.msra.mxu0 0.0
      %220 = vmatpush.msra.mxu0 0.0
      %221 = vmatpush.msra.mxu0 0.0
      %222 = vmatpush.msra.mxu0 0.0
      %223 = vmatpush.msra.mxu0 0.0
      %224 = vmatpush.msra.mxu0 0.0
      %225 = vmatpush.msra.mxu0 0.0
      %226 = vmatpush.msra.mxu0 0.0
      %227 = vmatpush.msra.mxu0 0.0
      %228 = vmatpush.msra.mxu0 0.0
      %229 = vmatpush.msra.mxu0 0.0
      %230 = vmatpush.msra.mxu0 0.0
      %231 = vmatpush.msra.mxu0 0.0
      %v232 = vand.u32 %v210, 4294901760
      %233 = vmatpush.msra.mxu0 %v232
      %v234 = vand.u32 %v189, 4294901760
      %235 = vmatpush.msra.mxu0 %v234
      %v236 = vand.u32 %v197, 4294901760
      %v237 = vsub.f32 %v197, %v236
      %v238 = vand.u32 %v237, 4294901760
      %v239 = vsub.f32 %v237, %v238
      %v240 = vand.u32 %v239, 4294901760
      %241 = vmatmul.f32.gmra.mxu0 %v240
      %v242 = vpop.f32.mrf.mxu0
      %v243 = vadd.f32 0.0, %v242
      %v244 = vand.u32 %v200, 4294901760
      %v245 = vsub.f32 %v200, %v244
      %v246 = vand.u32 %v245, 4294901760
      %v247 = vsub.f32 %v245, %v246
      %v248 = vand.u32 %v247, 4294901760
      %249 = vmatmul.f32.gmra.mxu0 %v248
      %v250 = vpop.f32.mrf.mxu0
      %v251 = vadd.f32 0.0, %v250
      %v252 = vand.u32 %v203, 4294901760
      %v253 = vsub.f32 %v203, %v252
      %v254 = vand.u32 %v253, 4294901760
      %v255 = vsub.f32 %v253, %v254
      %v256 = vand.u32 %v255, 4294901760
      %257 = vmatmul.f32.gmra.mxu0 %v256
      %v258 = vpop.f32.mrf.mxu0
      %v259 = vadd.f32 0.0, %v258
      %v260 = vand.u32 %v206, 4294901760
      %v261 = vsub.f32 %v206, %v260
      %v262 = vand.u32 %v261, 4294901760
      %v263 = vsub.f32 %v261, %v262
      %v264 = vand.u32 %v263, 4294901760
      %265 = vmatmul.f32.gmra.mxu0 %v264
      %v266 = vpop.f32.mrf.mxu0
      %v267 = vadd.f32 0.0, %v266
      %268 = vdwg.mxu0
      %269 = vmatpush.msra.mxu0 0.0
      %270 = vmatpush.msra.mxu0 0.0
      %271 = vmatpush.msra.mxu0 0.0
      %272 = vmatpush.msra.mxu0 0.0
      %273 = vmatpush.msra.mxu0 0.0
      %274 = vmatpush.msra.mxu0 0.0
      %275 = vmatpush.msra.mxu0 0.0
      %276 = vmatpush.msra.mxu0 0.0
      %277 = vmatpush.msra.mxu0 0.0
      %278 = vmatpush.msra.mxu0 0.0
      %279 = vmatpush.msra.mxu0 0.0
      %280 = vmatpush.msra.mxu0 0.0
      %281 = vmatpush.msra.mxu0 0.0
      %282 = vmatpush.msra.mxu0 0.0
      %v283 = vand.u32 %v210, 4294901760
      %v284 = vsub.f32 %v210, %v283
      %v285 = vand.u32 %v284, 4294901760
      %v286 = vsub.f32 %v284, %v285
      %v287 = vand.u32 %v286, 4294901760
      %288 = vmatpush.msra.mxu0 %v287
      %v289 = vand.u32 %v189, 4294901760
      %v290 = vsub.f32 %v189, %v289
      %v291 = vand.u32 %v290, 4294901760
      %v292 = vsub.f32 %v290, %v291
      %v293 = vand.u32 %v292, 4294901760
      %294 = vmatpush.msra.mxu0 %v293
      %v295 = vand.u32 %v197, 4294901760
      %296 = vmatmul.f32.gmra.mxu0 %v295
      %v297 = vpop.f32.mrf.mxu0
      %v298 = vadd.f32 %v243, %v297
      %v299 = vand.u32 %v200, 4294901760
      %300 = vmatmul.f32.gmra.mxu0 %v299
      %v301 = vpop.f32.mrf.mxu0
      %v302 = vadd.f32 %v251, %v301
      %v303 = vand.u32 %v203, 4294901760
      %304 = vmatmul.f32.gmra.mxu0 %v303
      %v305 = vpop.f32.mrf.mxu0
      %v306 = vadd.f32 %v259, %v305
      %v307 = vand.u32 %v206, 4294901760
      %308 = vmatmul.f32.gmra.mxu0 %v307
      %v309 = vpop.f32.mrf.mxu0
      %v310 = vadd.f32 %v267, %v309
      %311 = vdwg.mxu0
      %312 = vmatpush.msra.mxu0 0.0
      %313 = vmatpush.msra.mxu0 0.0
      %314 = vmatpush.msra.mxu0 0.0
      %315 = vmatpush.msra.mxu0 0.0
      %316 = vmatpush.msra.mxu0 0.0
      %317 = vmatpush.msra.mxu0 0.0
      %318 = vmatpush.msra.mxu0 0.0
      %319 = vmatpush.msra.mxu0 0.0
      %320 = vmatpush.msra.mxu0 0.0
      %321 = vmatpush.msra.mxu0 0.0
      %322 = vmatpush.msra.mxu0 0.0
      %323 = vmatpush.msra.mxu0 0.0
      %324 = vmatpush.msra.mxu0 0.0
      %325 = vmatpush.msra.mxu0 0.0
      %v326 = vand.u32 %v210, 4294901760
      %v327 = vsub.f32 %v210, %v326
      %328 = vmatpush.msra.mxu0 %v327
      %v329 = vand.u32 %v189, 4294901760
      %v330 = vsub.f32 %v189, %v329
      %331 = vmatpush.msra.mxu0 %v330
      %v332 = vand.u32 %v197, 4294901760
      %v333 = vsub.f32 %v197, %v332
      %334 = vmatmul.f32.gmra.mxu0 %v333
      %v335 = vpop.f32.mrf.mxu0
      %v336 = vadd.f32 %v298, %v335
      %v337 = vand.u32 %v200, 4294901760
      %v338 = vsub.f32 %v200, %v337
      %339 = vmatmul.f32.gmra.mxu0 %v338
      %v340 = vpop.f32.mrf.mxu0
      %v341 = vadd.f32 %v302, %v340
      %v342 = vand.u32 %v203, 4294901760
      %v343 = vsub.f32 %v203, %v342
      %344 = vmatmul.f32.gmra.mxu0 %v343
      %v345 = vpop.f32.mrf.mxu0
      %v346 = vadd.f32 %v306, %v345
      %v347 = vand.u32 %v206, 4294901760
      %v348 = vsub.f32 %v206, %v347
      %349 = vmatmul.f32.gmra.mxu0 %v348
      %v350 = vpop.f32.mrf.mxu0
      %v351 = vadd.f32 %v310, %v350
      %352 = vdwg.mxu0
      %353 = vmatpush.msra.mxu0 0.0
      %354 = vmatpush.msra.mxu0 0.0
      %355 = vmatpush.msra.mxu0 0.0
      %356 = vmatpush.msra.mxu0 0.0
      %357 = vmatpush.msra.mxu0 0.0
      %358 = vmatpush.msra.mxu0 0.0
      %359 = vmatpush.msra.mxu0 0.0
      %360 = vmatpush.msra.mxu0 0.0
      %361 = vmatpush.msra.mxu0 0.0
      %362 = vmatpush.msra.mxu0 0.0
      %363 = vmatpush.msra.mxu0 0.0
      %364 = vmatpush.msra.mxu0 0.0
      %365 = vmatpush.msra.mxu0 0.0
      %366 = vmatpush.msra.mxu0 0.0
      %v367 = vand.u32 %v210, 4294901760
      %368 = vmatpush.msra.mxu0 %v367
      %v369 = vand.u32 %v189, 4294901760
      %370 = vmatpush.msra.mxu0 %v369
      %v371 = vand.u32 %v197, 4294901760
      %v372 = vsub.f32 %v197, %v371
      %v373 = vand.u32 %v372, 4294901760
      %374 = vmatmul.f32.gmra.mxu0 %v373
      %v375 = vpop.f32.mrf.mxu0
      %v376 = vadd.f32 %v336, %v375
      %v377 = vand.u32 %v200, 4294901760
      %v378 = vsub.f32 %v200, %v377
      %v379 = vand.u32 %v378, 4294901760
      %380 = vmatmul.f32.gmra.mxu0 %v379
      %v381 = vpop.f32.mrf.mxu0
      %v382 = vadd.f32 %v341, %v381
      %v383 = vand.u32 %v203, 4294901760
      %v384 = vsub.f32 %v203, %v383
      %v385 = vand.u32 %v384, 4294901760
      %386 = vmatmul.f32.gmra.mxu0 %v385
      %v387 = vpop.f32.mrf.mxu0
      %v388 = vadd.f32 %v346, %v387
      %v389 = vand.u32 %v206, 4294901760
      %v390 = vsub.f32 %v206, %v389
      %v391 = vand.u32 %v390, 4294901760
      %392 = vmatmul.f32.gmra.mxu0 %v391
      %v393 = vpop.f32.mrf.mxu0
      %v394 = vadd.f32 %v351, %v393
      %395 = vdwg.mxu0
      %396 = vmatpush.msra.mxu0 0.0
      %397 = vmatpush.msra.mxu0 0.0
      %398 = vmatpush.msra.mxu0 0.0
      %399 = vmatpush.msra.mxu0 0.0
      %400 = vmatpush.msra.mxu0 0.0
      %401 = vmatpush.msra.mxu0 0.0
      %402 = vmatpush.msra.mxu0 0.0
      %403 = vmatpush.msra.mxu0 0.0
      %404 = vmatpush.msra.mxu0 0.0
      %405 = vmatpush.msra.mxu0 0.0
      %406 = vmatpush.msra.mxu0 0.0
      %407 = vmatpush.msra.mxu0 0.0
      %408 = vmatpush.msra.mxu0 0.0
      %409 = vmatpush.msra.mxu0 0.0
      %v410 = vand.u32 %v210, 4294901760
      %v411 = vsub.f32 %v210, %v410
      %v412 = vand.u32 %v411, 4294901760
      %413 = vmatpush.msra.mxu0 %v412
      %v414 = vand.u32 %v189, 4294901760
      %v415 = vsub.f32 %v189, %v414
      %v416 = vand.u32 %v415, 4294901760
      %417 = vmatpush.msra.mxu0 %v416
      %v418 = vand.u32 %v197, 4294901760
      %419 = vmatmul.f32.gmra.mxu0 %v418
      %v420 = vpop.f32.mrf.mxu0
      %v421 = vadd.f32 %v376, %v420
      %v422 = vand.u32 %v200, 4294901760
      %423 = vmatmul.f32.gmra.mxu0 %v422
      %v424 = vpop.f32.mrf.mxu0
      %v425 = vadd.f32 %v382, %v424
      %v426 = vand.u32 %v203, 4294901760
      %427 = vmatmul.f32.gmra.mxu0 %v426
      %v428 = vpop.f32.mrf.mxu0
      %v429 = vadd.f32 %v388, %v428
      %v430 = vand.u32 %v206, 4294901760
      %431 = vmatmul.f32.gmra.mxu0 %v430
      %v432 = vpop.f32.mrf.mxu0
      %v433 = vadd.f32 %v394, %v432
      %434 = vdwg.mxu0
      %435 = vmatpush.msra.mxu0 0.0
      %436 = vmatpush.msra.mxu0 0.0
      %437 = vmatpush.msra.mxu0 0.0
      %438 = vmatpush.msra.mxu0 0.0
      %439 = vmatpush.msra.mxu0 0.0
      %440 = vmatpush.msra.mxu0 0.0
      %441 = vmatpush.msra.mxu0 0.0
      %442 = vmatpush.msra.mxu0 0.0
      %443 = vmatpush.msra.mxu0 0.0
      %444 = vmatpush.msra.mxu0 0.0
      %445 = vmatpush.msra.mxu0 0.0
      %446 = vmatpush.msra.mxu0 0.0
      %447 = vmatpush.msra.mxu0 0.0
      %448 = vmatpush.msra.mxu0 0.0
      %v449 = vand.u32 %v210, 4294901760
      %450 = vmatpush.msra.mxu0 %v449
      %v451 = vand.u32 %v189, 4294901760
      %452 = vmatpush.msra.mxu0 %v451
      %v453 = vand.u32 %v197, 4294901760
      %454 = vmatmul.f32.gmra.mxu0 %v453
      %v455 = vpop.f32.mrf.mxu0
      %v456 = vadd.f32 %v421, %v455
      %v457 = vand.u32 %v200, 4294901760
      %458 = vmatmul.f32.gmra.mxu0 %v457
      %v459 = vpop.f32.mrf.mxu0
      %v460 = vadd.f32 %v425, %v459
      %v461 = vand.u32 %v203, 4294901760
      %462 = vmatmul.f32.gmra.mxu0 %v461
      %v463 = vpop.f32.mrf.mxu0
      %v464 = vadd.f32 %v429, %v463
      %v465 = vand.u32 %v206, 4294901760
      %466 = vmatmul.f32.gmra.mxu0 %v465
      %v467 = vpop.f32.mrf.mxu0
      %v468 = vadd.f32 %v433, %v467
      %469 = vdwg.mxu0
      %470 = vmatpush.msra.mxu0 0.0
      %471 = vmatpush.msra.mxu0 0.0
      %472 = vmatpush.msra.mxu0 0.0
      %473 = vmatpush.msra.mxu0 0.0
      %474 = vmatpush.msra.mxu0 0.0
      %475 = vmatpush.msra.mxu0 0.0
      %476 = vmatpush.msra.mxu0 0.0
      %477 = vmatpush.msra.mxu0 0.0
      %478 = vmatpush.msra.mxu0 0.0
      %479 = vmatpush.msra.mxu0 0.0
      %480 = vmatpush.msra.mxu0 0.0
      %481 = vmatpush.msra.mxu0 0.0
      %482 = vmatpush.msra.mxu0 0.0
      %483 = vmatpush.msra.mxu0 0.0
      %v484 = vand.u32 %v213, 4294901760
      %485 = vmatpush.msra.mxu0 %v484
      %v486 = vand.u32 %v190, 4294901760
      %487 = vmatpush.msra.mxu0 %v486
      %v488 = vand.u32 %v197, 4294901760
      %v489 = vsub.f32 %v197, %v488
      %v490 = vand.u32 %v489, 4294901760
      %v491 = vsub.f32 %v489, %v490
      %v492 = vand.u32 %v491, 4294901760
      %493 = vmatmul.f32.gmra.mxu0 %v492
      %v494 = vpop.f32.mrf.mxu0
      %v495 = vadd.f32 0.0, %v494
      %v496 = vand.u32 %v200, 4294901760
      %v497 = vsub.f32 %v200, %v496
      %v498 = vand.u32 %v497, 4294901760
      %v499 = vsub.f32 %v497, %v498
      %v500 = vand.u32 %v499, 4294901760
      %501 = vmatmul.f32.gmra.mxu0 %v500
      %v502 = vpop.f32.mrf.mxu0
      %v503 = vadd.f32 0.0, %v502
      %v504 = vand.u32 %v203, 4294901760
      %v505 = vsub.f32 %v203, %v504
      %v506 = vand.u32 %v505, 4294901760
      %v507 = vsub.f32 %v505, %v506
      %v508 = vand.u32 %v507, 4294901760
      %509 = vmatmul.f32.gmra.mxu0 %v508
      %v510 = vpop.f32.mrf.mxu0
      %v511 = vadd.f32 0.0, %v510
      %v512 = vand.u32 %v206, 4294901760
      %v513 = vsub.f32 %v206, %v512
      %v514 = vand.u32 %v513, 4294901760
      %v515 = vsub.f32 %v513, %v514
      %v516 = vand.u32 %v515, 4294901760
      %517 = vmatmul.f32.gmra.mxu0 %v516
      %v518 = vpop.f32.mrf.mxu0
      %v519 = vadd.f32 0.0, %v518
      %520 = vdwg.mxu0
      %521 = vmatpush.msra.mxu0 0.0
      %522 = vmatpush.msra.mxu0 0.0
      %523 = vmatpush.msra.mxu0 0.0
      %524 = vmatpush.msra.mxu0 0.0
      %525 = vmatpush.msra.mxu0 0.0
      %526 = vmatpush.msra.mxu0 0.0
      %527 = vmatpush.msra.mxu0 0.0
      %528 = vmatpush.msra.mxu0 0.0
      %529 = vmatpush.msra.mxu0 0.0
      %530 = vmatpush.msra.mxu0 0.0
      %531 = vmatpush.msra.mxu0 0.0
      %532 = vmatpush.msra.mxu0 0.0
      %533 = vmatpush.msra.mxu0 0.0
      %534 = vmatpush.msra.mxu0 0.0
      %v535 = vand.u32 %v213, 4294901760
      %v536 = vsub.f32 %v213, %v535
      %v537 = vand.u32 %v536, 4294901760
      %v538 = vsub.f32 %v536, %v537
      %v539 = vand.u32 %v538, 4294901760
      %540 = vmatpush.msra.mxu0 %v539
      %v541 = vand.u32 %v190, 4294901760
      %v542 = vsub.f32 %v190, %v541
      %v543 = vand.u32 %v542, 4294901760
      %v544 = vsub.f32 %v542, %v543
      %v545 = vand.u32 %v544, 4294901760
      %546 = vmatpush.msra.mxu0 %v545
      %v547 = vand.u32 %v197, 4294901760
      %548 = vmatmul.f32.gmra.mxu0 %v547
      %v549 = vpop.f32.mrf.mxu0
      %v550 = vadd.f32 %v495, %v549
      %v551 = vand.u32 %v200, 4294901760
      %552 = vmatmul.f32.gmra.mxu0 %v551
      %v553 = vpop.f32.mrf.mxu0
      %v554 = vadd.f32 %v503, %v553
      %v555 = vand.u32 %v203, 4294901760
      %556 = vmatmul.f32.gmra.mxu0 %v555
      %v557 = vpop.f32.mrf.mxu0
      %v558 = vadd.f32 %v511, %v557
      %v559 = vand.u32 %v206, 4294901760
      %560 = vmatmul.f32.gmra.mxu0 %v559
      %v561 = vpop.f32.mrf.mxu0
      %v562 = vadd.f32 %v519, %v561
      %563 = vdwg.mxu0
      %564 = vmatpush.msra.mxu0 0.0
      %565 = vmatpush.msra.mxu0 0.0
      %566 = vmatpush.msra.mxu0 0.0
      %567 = vmatpush.msra.mxu0 0.0
      %568 = vmatpush.msra.mxu0 0.0
      %569 = vmatpush.msra.mxu0 0.0
      %570 = vmatpush.msra.mxu0 0.0
      %571 = vmatpush.msra.mxu0 0.0
      %572 = vmatpush.msra.mxu0 0.0
      %573 = vmatpush.msra.mxu0 0.0
      %574 = vmatpush.msra.mxu0 0.0
      %575 = vmatpush.msra.mxu0 0.0
      %576 = vmatpush.msra.mxu0 0.0
      %577 = vmatpush.msra.mxu0 0.0
      %v578 = vand.u32 %v213, 4294901760
      %v579 = vsub.f32 %v213, %v578
      %580 = vmatpush.msra.mxu0 %v579
      %v581 = vand.u32 %v190, 4294901760
      %v582 = vsub.f32 %v190, %v581
      %583 = vmatpush.msra.mxu0 %v582
      %v584 = vand.u32 %v197, 4294901760
      %v585 = vsub.f32 %v197, %v584
      %586 = vmatmul.f32.gmra.mxu0 %v585
      %v587 = vpop.f32.mrf.mxu0
      %v588 = vadd.f32 %v550, %v587
      %v589 = vand.u32 %v200, 4294901760
      %v590 = vsub.f32 %v200, %v589
      %591 = vmatmul.f32.gmra.mxu0 %v590
      %v592 = vpop.f32.mrf.mxu0
      %v593 = vadd.f32 %v554, %v592
      %v594 = vand.u32 %v203, 4294901760
      %v595 = vsub.f32 %v203, %v594
      %596 = vmatmul.f32.gmra.mxu0 %v595
      %v597 = vpop.f32.mrf.mxu0
      %v598 = vadd.f32 %v558, %v597
      %v599 = vand.u32 %v206, 4294901760
      %v600 = vsub.f32 %v206, %v599
      %601 = vmatmul.f32.gmra.mxu0 %v600
      %v602 = vpop.f32.mrf.mxu0
      %v603 = vadd.f32 %v562, %v602
      %604 = vdwg.mxu0
      %605 = vmatpush.msra.mxu0 0.0
      %606 = vmatpush.msra.mxu0 0.0
      %607 = vmatpush.msra.mxu0 0.0
      %608 = vmatpush.msra.mxu0 0.0
      %609 = vmatpush.msra.mxu0 0.0
      %610 = vmatpush.msra.mxu0 0.0
      %611 = vmatpush.msra.mxu0 0.0
      %612 = vmatpush.msra.mxu0 0.0
      %613 = vmatpush.msra.mxu0 0.0
      %614 = vmatpush.msra.mxu0 0.0
      %615 = vmatpush.msra.mxu0 0.0
      %616 = vmatpush.msra.mxu0 0.0
      %617 = vmatpush.msra.mxu0 0.0
      %618 = vmatpush.msra.mxu0 0.0
      %v619 = vand.u32 %v213, 4294901760
      %620 = vmatpush.msra.mxu0 %v619
      %v621 = vand.u32 %v190, 4294901760
      %622 = vmatpush.msra.mxu0 %v621
      %v623 = vand.u32 %v197, 4294901760
      %v624 = vsub.f32 %v197, %v623
      %v625 = vand.u32 %v624, 4294901760
      %626 = vmatmul.f32.gmra.mxu0 %v625
      %v627 = vpop.f32.mrf.mxu0
      %v628 = vadd.f32 %v588, %v627
      %v629 = vand.u32 %v200, 4294901760
      %v630 = vsub.f32 %v200, %v629
      %v631 = vand.u32 %v630, 4294901760
      %632 = vmatmul.f32.gmra.mxu0 %v631
      %v633 = vpop.f32.mrf.mxu0
      %v634 = vadd.f32 %v593, %v633
      %v635 = vand.u32 %v203, 4294901760
      %v636 = vsub.f32 %v203, %v635
      %v637 = vand.u32 %v636, 4294901760
      %638 = vmatmul.f32.gmra.mxu0 %v637
      %v639 = vpop.f32.mrf.mxu0
      %v640 = vadd.f32 %v598, %v639
      %v641 = vand.u32 %v206, 4294901760
      %v642 = vsub.f32 %v206, %v641
      %v643 = vand.u32 %v642, 4294901760
      %644 = vmatmul.f32.gmra.mxu0 %v643
      %v645 = vpop.f32.mrf.mxu0
      %v646 = vadd.f32 %v603, %v645
      %647 = vdwg.mxu0
      %648 = vmatpush.msra.mxu0 0.0
      %649 = vmatpush.msra.mxu0 0.0
      %650 = vmatpush.msra.mxu0 0.0
      %651 = vmatpush.msra.mxu0 0.0
      %652 = vmatpush.msra.mxu0 0.0
      %653 = vmatpush.msra.mxu0 0.0
      %654 = vmatpush.msra.mxu0 0.0
      %655 = vmatpush.msra.mxu0 0.0
      %656 = vmatpush.msra.mxu0 0.0
      %657 = vmatpush.msra.mxu0 0.0
      %658 = vmatpush.msra.mxu0 0.0
      %659 = vmatpush.msra.mxu0 0.0
      %660 = vmatpush.msra.mxu0 0.0
      %661 = vmatpush.msra.mxu0 0.0
      %v662 = vand.u32 %v213, 4294901760
      %v663 = vsub.f32 %v213, %v662
      %v664 = vand.u32 %v663, 4294901760
      %665 = vmatpush.msra.mxu0 %v664
      %v666 = vand.u32 %v190, 4294901760
      %v667 = vsub.f32 %v190, %v666
      %v668 = vand.u32 %v667, 4294901760
      %669 = vmatpush.msra.mxu0 %v668
      %v670 = vand.u32 %v197, 4294901760
      %671 = vmatmul.f32.gmra.mxu0 %v670
      %v672 = vpop.f32.mrf.mxu0
      %v673 = vadd.f32 %v628, %v672
      %v674 = vand.u32 %v200, 4294901760
      %675 = vmatmul.f32.gmra.mxu0 %v674
      %v676 = vpop.f32.mrf.mxu0
      %v677 = vadd.f32 %v634, %v676
      %v678 = vand.u32 %v203, 4294901760
      %679 = vmatmul.f32.gmra.mxu0 %v678
      %v680 = vpop.f32.mrf.mxu0
      %v681 = vadd.f32 %v640, %v680
      %v682 = vand.u32 %v206, 4294901760
      %683 = vmatmul.f32.gmra.mxu0 %v682
      %v684 = vpop.f32.mrf.mxu0
      %v685 = vadd.f32 %v646, %v684
      %686 = vdwg.mxu0
      %687 = vmatpush.msra.mxu0 0.0
      %688 = vmatpush.msra.mxu0 0.0
      %689 = vmatpush.msra.mxu0 0.0
      %690 = vmatpush.msra.mxu0 0.0
      %691 = vmatpush.msra.mxu0 0.0
      %692 = vmatpush.msra.mxu0 0.0
      %693 = vmatpush.msra.mxu0 0.0
      %694 = vmatpush.msra.mxu0 0.0
      %695 = vmatpush.msra.mxu0 0.0
      %696 = vmatpush.msra.mxu0 0.0
      %697 = vmatpush.msra.mxu0 0.0
      %698 = vmatpush.msra.mxu0 0.0
      %699 = vmatpush.msra.mxu0 0.0
      %700 = vmatpush.msra.mxu0 0.0
      %v701 = vand.u32 %v213, 4294901760
      %702 = vmatpush.msra.mxu0 %v701
      %v703 = vand.u32 %v190, 4294901760
      %704 = vmatpush.msra.mxu0 %v703
      %v705 = vand.u32 %v197, 4294901760
      %706 = vmatmul.f32.gmra.mxu0 %v705
      %v707 = vpop.f32.mrf.mxu0
      %v708 = vadd.f32 %v673, %v707
      %v709 = vand.u32 %v200, 4294901760
      %710 = vmatmul.f32.gmra.mxu0 %v709
      %v711 = vpop.f32.mrf.mxu0
      %v712 = vadd.f32 %v677, %v711
      %v713 = vand.u32 %v203, 4294901760
      %714 = vmatmul.f32.gmra.mxu0 %v713
      %v715 = vpop.f32.mrf.mxu0
      %v716 = vadd.f32 %v681, %v715
      %v717 = vand.u32 %v206, 4294901760
      %718 = vmatmul.f32.gmra.mxu0 %v717
      %v719 = vpop.f32.mrf.mxu0
      %v720 = vadd.f32 %v685, %v719
      %721 = vdwg.mxu0
      %722 = vmatpush.msra.mxu0 0.0
      %723 = vmatpush.msra.mxu0 0.0
      %724 = vmatpush.msra.mxu0 0.0
      %725 = vmatpush.msra.mxu0 0.0
      %726 = vmatpush.msra.mxu0 0.0
      %727 = vmatpush.msra.mxu0 0.0
      %728 = vmatpush.msra.mxu0 0.0
      %729 = vmatpush.msra.mxu0 0.0
      %730 = vmatpush.msra.mxu0 0.0
      %731 = vmatpush.msra.mxu0 0.0
      %732 = vmatpush.msra.mxu0 0.0
      %733 = vmatpush.msra.mxu0 0.0
      %734 = vmatpush.msra.mxu0 0.0
      %735 = vmatpush.msra.mxu0 0.0
      %v736 = vand.u32 %v216, 4294901760
      %737 = vmatpush.msra.mxu0 %v736
      %v738 = vand.u32 %v191, 4294901760
      %739 = vmatpush.msra.mxu0 %v738
      %v740 = vand.u32 %v197, 4294901760
      %v741 = vsub.f32 %v197, %v740
      %v742 = vand.u32 %v741, 4294901760
      %v743 = vsub.f32 %v741, %v742
      %v744 = vand.u32 %v743, 4294901760
      %745 = vmatmul.f32.gmra.mxu0 %v744
      %v746 = vpop.f32.mrf.mxu0
      %v747 = vadd.f32 0.0, %v746
      %v748 = vand.u32 %v200, 4294901760
      %v749 = vsub.f32 %v200, %v748
      %v750 = vand.u32 %v749, 4294901760
      %v751 = vsub.f32 %v749, %v750
      %v752 = vand.u32 %v751, 4294901760
      %753 = vmatmul.f32.gmra.mxu0 %v752
      %v754 = vpop.f32.mrf.mxu0
      %v755 = vadd.f32 0.0, %v754
      %v756 = vand.u32 %v203, 4294901760
      %v757 = vsub.f32 %v203, %v756
      %v758 = vand.u32 %v757, 4294901760
      %v759 = vsub.f32 %v757, %v758
      %v760 = vand.u32 %v759, 4294901760
      %761 = vmatmul.f32.gmra.mxu0 %v760
      %v762 = vpop.f32.mrf.mxu0
      %v763 = vadd.f32 0.0, %v762
      %v764 = vand.u32 %v206, 4294901760
      %v765 = vsub.f32 %v206, %v764
      %v766 = vand.u32 %v765, 4294901760
      %v767 = vsub.f32 %v765, %v766
      %v768 = vand.u32 %v767, 4294901760
      %769 = vmatmul.f32.gmra.mxu0 %v768
      %v770 = vpop.f32.mrf.mxu0
      %v771 = vadd.f32 0.0, %v770
      %772 = vdwg.mxu0
      %773 = vmatpush.msra.mxu0 0.0
      %774 = vmatpush.msra.mxu0 0.0
      %775 = vmatpush.msra.mxu0 0.0
      %776 = vmatpush.msra.mxu0 0.0
      %777 = vmatpush.msra.mxu0 0.0
      %778 = vmatpush.msra.mxu0 0.0
      %779 = vmatpush.msra.mxu0 0.0
      %780 = vmatpush.msra.mxu0 0.0
      %781 = vmatpush.msra.mxu0 0.0
      %782 = vmatpush.msra.mxu0 0.0
      %783 = vmatpush.msra.mxu0 0.0
      %784 = vmatpush.msra.mxu0 0.0
      %785 = vmatpush.msra.mxu0 0.0
      %786 = vmatpush.msra.mxu0 0.0
      %v787 = vand.u32 %v216, 4294901760
      %v788 = vsub.f32 %v216, %v787
      %v789 = vand.u32 %v788, 4294901760
      %v790 = vsub.f32 %v788, %v789
      %v791 = vand.u32 %v790, 4294901760
      %792 = vmatpush.msra.mxu0 %v791
      %v793 = vand.u32 %v191, 4294901760
      %v794 = vsub.f32 %v191, %v793
      %v795 = vand.u32 %v794, 4294901760
      %v796 = vsub.f32 %v794, %v795
      %v797 = vand.u32 %v796, 4294901760
      %798 = vmatpush.msra.mxu0 %v797
      %v799 = vand.u32 %v197, 4294901760
      %800 = vmatmul.f32.gmra.mxu0 %v799
      %v801 = vpop.f32.mrf.mxu0
      %v802 = vadd.f32 %v747, %v801
      %v803 = vand.u32 %v200, 4294901760
      %804 = vmatmul.f32.gmra.mxu0 %v803
      %v805 = vpop.f32.mrf.mxu0
      %v806 = vadd.f32 %v755, %v805
      %v807 = vand.u32 %v203, 4294901760
      %808 = vmatmul.f32.gmra.mxu0 %v807
      %v809 = vpop.f32.mrf.mxu0
      %v810 = vadd.f32 %v763, %v809
      %v811 = vand.u32 %v206, 4294901760
      %812 = vmatmul.f32.gmra.mxu0 %v811
      %v813 = vpop.f32.mrf.mxu0
      %v814 = vadd.f32 %v771, %v813
      %815 = vdwg.mxu0
      %816 = vmatpush.msra.mxu0 0.0
      %817 = vmatpush.msra.mxu0 0.0
      %818 = vmatpush.msra.mxu0 0.0
      %819 = vmatpush.msra.mxu0 0.0
      %820 = vmatpush.msra.mxu0 0.0
      %821 = vmatpush.msra.mxu0 0.0
      %822 = vmatpush.msra.mxu0 0.0
      %823 = vmatpush.msra.mxu0 0.0
      %824 = vmatpush.msra.mxu0 0.0
      %825 = vmatpush.msra.mxu0 0.0
      %826 = vmatpush.msra.mxu0 0.0
      %827 = vmatpush.msra.mxu0 0.0
      %828 = vmatpush.msra.mxu0 0.0
      %829 = vmatpush.msra.mxu0 0.0
      %v830 = vand.u32 %v216, 4294901760
      %v831 = vsub.f32 %v216, %v830
      %832 = vmatpush.msra.mxu0 %v831
      %v833 = vand.u32 %v191, 4294901760
      %v834 = vsub.f32 %v191, %v833
      %835 = vmatpush.msra.mxu0 %v834
      %v836 = vand.u32 %v197, 4294901760
      %v837 = vsub.f32 %v197, %v836
      %838 = vmatmul.f32.gmra.mxu0 %v837
      %v839 = vpop.f32.mrf.mxu0
      %v840 = vadd.f32 %v802, %v839
      %v841 = vand.u32 %v200, 4294901760
      %v842 = vsub.f32 %v200, %v841
      %843 = vmatmul.f32.gmra.mxu0 %v842
      %v844 = vpop.f32.mrf.mxu0
      %v845 = vadd.f32 %v806, %v844
      %v846 = vand.u32 %v203, 4294901760
      %v847 = vsub.f32 %v203, %v846
      %848 = vmatmul.f32.gmra.mxu0 %v847
      %v849 = vpop.f32.mrf.mxu0
      %v850 = vadd.f32 %v810, %v849
      %v851 = vand.u32 %v206, 4294901760
      %v852 = vsub.f32 %v206, %v851
      %853 = vmatmul.f32.gmra.mxu0 %v852
      %v854 = vpop.f32.mrf.mxu0
      %v855 = vadd.f32 %v814, %v854
      %856 = vdwg.mxu0
      %857 = vmatpush.msra.mxu0 0.0
      %858 = vmatpush.msra.mxu0 0.0
      %859 = vmatpush.msra.mxu0 0.0
      %860 = vmatpush.msra.mxu0 0.0
      %861 = vmatpush.msra.mxu0 0.0
      %862 = vmatpush.msra.mxu0 0.0
      %863 = vmatpush.msra.mxu0 0.0
      %864 = vmatpush.msra.mxu0 0.0
      %865 = vmatpush.msra.mxu0 0.0
      %866 = vmatpush.msra.mxu0 0.0
      %867 = vmatpush.msra.mxu0 0.0
      %868 = vmatpush.msra.mxu0 0.0
      %869 = vmatpush.msra.mxu0 0.0
      %870 = vmatpush.msra.mxu0 0.0
      %v871 = vand.u32 %v216, 4294901760
      %872 = vmatpush.msra.mxu0 %v871
      %v873 = vand.u32 %v191, 4294901760
      %874 = vmatpush.msra.mxu0 %v873
      %v875 = vand.u32 %v197, 4294901760
      %v876 = vsub.f32 %v197, %v875
      %v877 = vand.u32 %v876, 4294901760
      %878 = vmatmul.f32.gmra.mxu0 %v877
      %v879 = vpop.f32.mrf.mxu0
      %v880 = vadd.f32 %v840, %v879
      %v881 = vand.u32 %v200, 4294901760
      %v882 = vsub.f32 %v200, %v881
      %v883 = vand.u32 %v882, 4294901760
      %884 = vmatmul.f32.gmra.mxu0 %v883
      %v885 = vpop.f32.mrf.mxu0
      %v886 = vadd.f32 %v845, %v885
      %v887 = vand.u32 %v203, 4294901760
      %v888 = vsub.f32 %v203, %v887
      %v889 = vand.u32 %v888, 4294901760
      %890 = vmatmul.f32.gmra.mxu0 %v889
      %v891 = vpop.f32.mrf.mxu0
      %v892 = vadd.f32 %v850, %v891
      %v893 = vand.u32 %v206, 4294901760
      %v894 = vsub.f32 %v206, %v893
      %v895 = vand.u32 %v894, 4294901760
      %896 = vmatmul.f32.gmra.mxu0 %v895
      %v897 = vpop.f32.mrf.mxu0
      %v898 = vadd.f32 %v855, %v897
      %899 = vdwg.mxu0
      %900 = vmatpush.msra.mxu0 0.0
      %901 = vmatpush.msra.mxu0 0.0
      %902 = vmatpush.msra.mxu0 0.0
      %903 = vmatpush.msra.mxu0 0.0
      %904 = vmatpush.msra.mxu0 0.0
      %905 = vmatpush.msra.mxu0 0.0
      %906 = vmatpush.msra.mxu0 0.0
      %907 = vmatpush.msra.mxu0 0.0
      %908 = vmatpush.msra.mxu0 0.0
      %909 = vmatpush.msra.mxu0 0.0
      %910 = vmatpush.msra.mxu0 0.0
      %911 = vmatpush.msra.mxu0 0.0
      %912 = vmatpush.msra.mxu0 0.0
      %913 = vmatpush.msra.mxu0 0.0
      %v914 = vand.u32 %v216, 4294901760
      %v915 = vsub.f32 %v216, %v914
      %v916 = vand.u32 %v915, 4294901760
      %917 = vmatpush.msra.mxu0 %v916
      %v918 = vand.u32 %v191, 4294901760
      %v919 = vsub.f32 %v191, %v918
      %v920 = vand.u32 %v919, 4294901760
      %921 = vmatpush.msra.mxu0 %v920
      %v922 = vand.u32 %v197, 4294901760
      %923 = vmatmul.f32.gmra.mxu0 %v922
      %v924 = vpop.f32.mrf.mxu0
      %v925 = vadd.f32 %v880, %v924
      %v926 = vand.u32 %v200, 4294901760
      %927 = vmatmul.f32.gmra.mxu0 %v926
      %v928 = vpop.f32.mrf.mxu0
      %v929 = vadd.f32 %v886, %v928
      %v930 = vand.u32 %v203, 4294901760
      %931 = vmatmul.f32.gmra.mxu0 %v930
      %v932 = vpop.f32.mrf.mxu0
      %v933 = vadd.f32 %v892, %v932
      %v934 = vand.u32 %v206, 4294901760
      %935 = vmatmul.f32.gmra.mxu0 %v934
      %v936 = vpop.f32.mrf.mxu0
      %v937 = vadd.f32 %v898, %v936
      %938 = vdwg.mxu0
      %939 = vmatpush.msra.mxu0 0.0
      %940 = vmatpush.msra.mxu0 0.0
      %941 = vmatpush.msra.mxu0 0.0
      %942 = vmatpush.msra.mxu0 0.0
      %943 = vmatpush.msra.mxu0 0.0
      %944 = vmatpush.msra.mxu0 0.0
      %945 = vmatpush.msra.mxu0 0.0
      %946 = vmatpush.msra.mxu0 0.0
      %947 = vmatpush.msra.mxu0 0.0
      %948 = vmatpush.msra.mxu0 0.0
      %949 = vmatpush.msra.mxu0 0.0
      %950 = vmatpush.msra.mxu0 0.0
      %951 = vmatpush.msra.mxu0 0.0
      %952 = vmatpush.msra.mxu0 0.0
      %v953 = vand.u32 %v216, 4294901760
      %954 = vmatpush.msra.mxu0 %v953
      %v955 = vand.u32 %v191, 4294901760
      %956 = vmatpush.msra.mxu0 %v955
      %v957 = vand.u32 %v197, 4294901760
      %958 = vmatmul.f32.gmra.mxu0 %v957
      %v959 = vpop.f32.mrf.mxu0
      %v960 = vadd.f32 %v925, %v959
      %v961 = vand.u32 %v200, 4294901760
      %962 = vmatmul.f32.gmra.mxu0 %v961
      %v963 = vpop.f32.mrf.mxu0
      %v964 = vadd.f32 %v929, %v963
      %v965 = vand.u32 %v203, 4294901760
      %966 = vmatmul.f32.gmra.mxu0 %v965
      %v967 = vpop.f32.mrf.mxu0
      %v968 = vadd.f32 %v933, %v967
      %v969 = vand.u32 %v206, 4294901760
      %970 = vmatmul.f32.gmra.mxu0 %v969
      %v971 = vpop.f32.mrf.mxu0
      %v972 = vadd.f32 %v937, %v971
      %973 = vdwg.mxu0
      %v974 = vmul.f32 %v189, %v189
      %v975 = vmul.f32 %v190, %v190
      %v976 = vmul.f32 %v191, %v191
      %v977 = vmul.f32 %v192, %v192
      %v978 = vmul.f32 %v193, %v193
      %v979 = vmul.f32 %v194, %v194
      %v981 = vsel %vm195, %v187, 0
      %v984 = vsel %vm195, %v188, 0
      %v987 = vsel %vm208, %v977, 0
      %v990 = vsel %vm208, %v978, 0
      %v993 = vsel %vm208, %v979, 0
      %995 = vmatpush.msra.mxu0 0.0
      %996 = vmatpush.msra.mxu0 0.0
      %997 = vmatpush.msra.mxu0 0.0
      %998 = vmatpush.msra.mxu0 0.0
      %999 = vmatpush.msra.mxu0 0.0
      %1000 = vmatpush.msra.mxu0 0.0
      %1001 = vmatpush.msra.mxu0 0.0
      %1002 = vmatpush.msra.mxu0 0.0
      %1003 = vmatpush.msra.mxu0 0.0
      %1004 = vmatpush.msra.mxu0 0.0
      %1005 = vmatpush.msra.mxu0 0.0
      %1006 = vmatpush.msra.mxu0 0.0
      %1007 = vmatpush.msra.mxu0 0.0
      %1008 = vmatpush.msra.mxu0 0.0
      %v1009 = vand.u32 %v987, 4294901760
      %1010 = vmatpush.msra.mxu0 %v1009
      %v1011 = vand.u32 %v974, 4294901760
      %1012 = vmatpush.msra.mxu0 %v1011
      %v1013 = vand.u32 %v981, 4294901760
      %v1014 = vsub.f32 %v981, %v1013
      %v1015 = vand.u32 %v1014, 4294901760
      %v1016 = vsub.f32 %v1014, %v1015
      %v1017 = vand.u32 %v1016, 4294901760
      %1018 = vmatmul.f32.gmra.mxu0 %v1017
      %v1019 = vpop.f32.mrf.mxu0
      %v1020 = vadd.f32 0.0, %v1019
      %v1021 = vand.u32 %v984, 4294901760
      %v1022 = vsub.f32 %v984, %v1021
      %v1023 = vand.u32 %v1022, 4294901760
      %v1024 = vsub.f32 %v1022, %v1023
      %v1025 = vand.u32 %v1024, 4294901760
      %1026 = vmatmul.f32.gmra.mxu0 %v1025
      %v1027 = vpop.f32.mrf.mxu0
      %v1028 = vadd.f32 0.0, %v1027
      %1029 = vdwg.mxu0
      %1030 = vmatpush.msra.mxu0 0.0
      %1031 = vmatpush.msra.mxu0 0.0
      %1032 = vmatpush.msra.mxu0 0.0
      %1033 = vmatpush.msra.mxu0 0.0
      %1034 = vmatpush.msra.mxu0 0.0
      %1035 = vmatpush.msra.mxu0 0.0
      %1036 = vmatpush.msra.mxu0 0.0
      %1037 = vmatpush.msra.mxu0 0.0
      %1038 = vmatpush.msra.mxu0 0.0
      %1039 = vmatpush.msra.mxu0 0.0
      %1040 = vmatpush.msra.mxu0 0.0
      %1041 = vmatpush.msra.mxu0 0.0
      %1042 = vmatpush.msra.mxu0 0.0
      %1043 = vmatpush.msra.mxu0 0.0
      %v1044 = vand.u32 %v987, 4294901760
      %v1045 = vsub.f32 %v987, %v1044
      %v1046 = vand.u32 %v1045, 4294901760
      %v1047 = vsub.f32 %v1045, %v1046
      %v1048 = vand.u32 %v1047, 4294901760
      %1049 = vmatpush.msra.mxu0 %v1048
      %v1050 = vand.u32 %v974, 4294901760
      %v1051 = vsub.f32 %v974, %v1050
      %v1052 = vand.u32 %v1051, 4294901760
      %v1053 = vsub.f32 %v1051, %v1052
      %v1054 = vand.u32 %v1053, 4294901760
      %1055 = vmatpush.msra.mxu0 %v1054
      %v1056 = vand.u32 %v981, 4294901760
      %1057 = vmatmul.f32.gmra.mxu0 %v1056
      %v1058 = vpop.f32.mrf.mxu0
      %v1059 = vadd.f32 %v1020, %v1058
      %v1060 = vand.u32 %v984, 4294901760
      %1061 = vmatmul.f32.gmra.mxu0 %v1060
      %v1062 = vpop.f32.mrf.mxu0
      %v1063 = vadd.f32 %v1028, %v1062
      %1064 = vdwg.mxu0
      %1065 = vmatpush.msra.mxu0 0.0
      %1066 = vmatpush.msra.mxu0 0.0
      %1067 = vmatpush.msra.mxu0 0.0
      %1068 = vmatpush.msra.mxu0 0.0
      %1069 = vmatpush.msra.mxu0 0.0
      %1070 = vmatpush.msra.mxu0 0.0
      %1071 = vmatpush.msra.mxu0 0.0
      %1072 = vmatpush.msra.mxu0 0.0
      %1073 = vmatpush.msra.mxu0 0.0
      %1074 = vmatpush.msra.mxu0 0.0
      %1075 = vmatpush.msra.mxu0 0.0
      %1076 = vmatpush.msra.mxu0 0.0
      %1077 = vmatpush.msra.mxu0 0.0
      %1078 = vmatpush.msra.mxu0 0.0
      %v1079 = vand.u32 %v987, 4294901760
      %v1080 = vsub.f32 %v987, %v1079
      %1081 = vmatpush.msra.mxu0 %v1080
      %v1082 = vand.u32 %v974, 4294901760
      %v1083 = vsub.f32 %v974, %v1082
      %1084 = vmatpush.msra.mxu0 %v1083
      %v1085 = vand.u32 %v981, 4294901760
      %v1086 = vsub.f32 %v981, %v1085
      %1087 = vmatmul.f32.gmra.mxu0 %v1086
      %v1088 = vpop.f32.mrf.mxu0
      %v1089 = vadd.f32 %v1059, %v1088
      %v1090 = vand.u32 %v984, 4294901760
      %v1091 = vsub.f32 %v984, %v1090
      %1092 = vmatmul.f32.gmra.mxu0 %v1091
      %v1093 = vpop.f32.mrf.mxu0
      %v1094 = vadd.f32 %v1063, %v1093
      %1095 = vdwg.mxu0
      %1096 = vmatpush.msra.mxu0 0.0
      %1097 = vmatpush.msra.mxu0 0.0
      %1098 = vmatpush.msra.mxu0 0.0
      %1099 = vmatpush.msra.mxu0 0.0
      %1100 = vmatpush.msra.mxu0 0.0
      %1101 = vmatpush.msra.mxu0 0.0
      %1102 = vmatpush.msra.mxu0 0.0
      %1103 = vmatpush.msra.mxu0 0.0
      %1104 = vmatpush.msra.mxu0 0.0
      %1105 = vmatpush.msra.mxu0 0.0
      %1106 = vmatpush.msra.mxu0 0.0
      %1107 = vmatpush.msra.mxu0 0.0
      %1108 = vmatpush.msra.mxu0 0.0
      %1109 = vmatpush.msra.mxu0 0.0
      %v1110 = vand.u32 %v987, 4294901760
      %1111 = vmatpush.msra.mxu0 %v1110
      %v1112 = vand.u32 %v974, 4294901760
      %1113 = vmatpush.msra.mxu0 %v1112
      %v1114 = vand.u32 %v981, 4294901760
      %v1115 = vsub.f32 %v981, %v1114
      %v1116 = vand.u32 %v1115, 4294901760
      %1117 = vmatmul.f32.gmra.mxu0 %v1116
      %v1118 = vpop.f32.mrf.mxu0
      %v1119 = vadd.f32 %v1089, %v1118
      %v1120 = vand.u32 %v984, 4294901760
      %v1121 = vsub.f32 %v984, %v1120
      %v1122 = vand.u32 %v1121, 4294901760
      %1123 = vmatmul.f32.gmra.mxu0 %v1122
      %v1124 = vpop.f32.mrf.mxu0
      %v1125 = vadd.f32 %v1094, %v1124
      %1126 = vdwg.mxu0
      %1127 = vmatpush.msra.mxu0 0.0
      %1128 = vmatpush.msra.mxu0 0.0
      %1129 = vmatpush.msra.mxu0 0.0
      %1130 = vmatpush.msra.mxu0 0.0
      %1131 = vmatpush.msra.mxu0 0.0
      %1132 = vmatpush.msra.mxu0 0.0
      %1133 = vmatpush.msra.mxu0 0.0
      %1134 = vmatpush.msra.mxu0 0.0
      %1135 = vmatpush.msra.mxu0 0.0
      %1136 = vmatpush.msra.mxu0 0.0
      %1137 = vmatpush.msra.mxu0 0.0
      %1138 = vmatpush.msra.mxu0 0.0
      %1139 = vmatpush.msra.mxu0 0.0
      %1140 = vmatpush.msra.mxu0 0.0
      %v1141 = vand.u32 %v987, 4294901760
      %v1142 = vsub.f32 %v987, %v1141
      %v1143 = vand.u32 %v1142, 4294901760
      %1144 = vmatpush.msra.mxu0 %v1143
      %v1145 = vand.u32 %v974, 4294901760
      %v1146 = vsub.f32 %v974, %v1145
      %v1147 = vand.u32 %v1146, 4294901760
      %1148 = vmatpush.msra.mxu0 %v1147
      %v1149 = vand.u32 %v981, 4294901760
      %1150 = vmatmul.f32.gmra.mxu0 %v1149
      %v1151 = vpop.f32.mrf.mxu0
      %v1152 = vadd.f32 %v1119, %v1151
      %v1153 = vand.u32 %v984, 4294901760
      %1154 = vmatmul.f32.gmra.mxu0 %v1153
      %v1155 = vpop.f32.mrf.mxu0
      %v1156 = vadd.f32 %v1125, %v1155
      %1157 = vdwg.mxu0
      %1158 = vmatpush.msra.mxu0 0.0
      %1159 = vmatpush.msra.mxu0 0.0
      %1160 = vmatpush.msra.mxu0 0.0
      %1161 = vmatpush.msra.mxu0 0.0
      %1162 = vmatpush.msra.mxu0 0.0
      %1163 = vmatpush.msra.mxu0 0.0
      %1164 = vmatpush.msra.mxu0 0.0
      %1165 = vmatpush.msra.mxu0 0.0
      %1166 = vmatpush.msra.mxu0 0.0
      %1167 = vmatpush.msra.mxu0 0.0
      %1168 = vmatpush.msra.mxu0 0.0
      %1169 = vmatpush.msra.mxu0 0.0
      %1170 = vmatpush.msra.mxu0 0.0
      %1171 = vmatpush.msra.mxu0 0.0
      %v1172 = vand.u32 %v987, 4294901760
      %1173 = vmatpush.msra.mxu0 %v1172
      %v1174 = vand.u32 %v974, 4294901760
      %1175 = vmatpush.msra.mxu0 %v1174
      %v1176 = vand.u32 %v981, 4294901760
      %1177 = vmatmul.f32.gmra.mxu0 %v1176
      %v1178 = vpop.f32.mrf.mxu0
      %v1179 = vadd.f32 %v1152, %v1178
      %v1180 = vand.u32 %v984, 4294901760
      %1181 = vmatmul.f32.gmra.mxu0 %v1180
      %v1182 = vpop.f32.mrf.mxu0
      %v1183 = vadd.f32 %v1156, %v1182
      %1184 = vdwg.mxu0
      %1185 = vmatpush.msra.mxu0 0.0
      %1186 = vmatpush.msra.mxu0 0.0
      %1187 = vmatpush.msra.mxu0 0.0
      %1188 = vmatpush.msra.mxu0 0.0
      %1189 = vmatpush.msra.mxu0 0.0
      %1190 = vmatpush.msra.mxu0 0.0
      %1191 = vmatpush.msra.mxu0 0.0
      %1192 = vmatpush.msra.mxu0 0.0
      %1193 = vmatpush.msra.mxu0 0.0
      %1194 = vmatpush.msra.mxu0 0.0
      %1195 = vmatpush.msra.mxu0 0.0
      %1196 = vmatpush.msra.mxu0 0.0
      %1197 = vmatpush.msra.mxu0 0.0
      %1198 = vmatpush.msra.mxu0 0.0
      %v1199 = vand.u32 %v990, 4294901760
      %1200 = vmatpush.msra.mxu0 %v1199
      %v1201 = vand.u32 %v975, 4294901760
      %1202 = vmatpush.msra.mxu0 %v1201
      %v1203 = vand.u32 %v981, 4294901760
      %v1204 = vsub.f32 %v981, %v1203
      %v1205 = vand.u32 %v1204, 4294901760
      %v1206 = vsub.f32 %v1204, %v1205
      %v1207 = vand.u32 %v1206, 4294901760
      %1208 = vmatmul.f32.gmra.mxu0 %v1207
      %v1209 = vpop.f32.mrf.mxu0
      %v1210 = vadd.f32 0.0, %v1209
      %v1211 = vand.u32 %v984, 4294901760
      %v1212 = vsub.f32 %v984, %v1211
      %v1213 = vand.u32 %v1212, 4294901760
      %v1214 = vsub.f32 %v1212, %v1213
      %v1215 = vand.u32 %v1214, 4294901760
      %1216 = vmatmul.f32.gmra.mxu0 %v1215
      %v1217 = vpop.f32.mrf.mxu0
      %v1218 = vadd.f32 0.0, %v1217
      %1219 = vdwg.mxu0
      %1220 = vmatpush.msra.mxu0 0.0
      %1221 = vmatpush.msra.mxu0 0.0
      %1222 = vmatpush.msra.mxu0 0.0
      %1223 = vmatpush.msra.mxu0 0.0
      %1224 = vmatpush.msra.mxu0 0.0
      %1225 = vmatpush.msra.mxu0 0.0
      %1226 = vmatpush.msra.mxu0 0.0
      %1227 = vmatpush.msra.mxu0 0.0
      %1228 = vmatpush.msra.mxu0 0.0
      %1229 = vmatpush.msra.mxu0 0.0
      %1230 = vmatpush.msra.mxu0 0.0
      %1231 = vmatpush.msra.mxu0 0.0
      %1232 = vmatpush.msra.mxu0 0.0
      %1233 = vmatpush.msra.mxu0 0.0
      %v1234 = vand.u32 %v990, 4294901760
      %v1235 = vsub.f32 %v990, %v1234
      %v1236 = vand.u32 %v1235, 4294901760
      %v1237 = vsub.f32 %v1235, %v1236
      %v1238 = vand.u32 %v1237, 4294901760
      %1239 = vmatpush.msra.mxu0 %v1238
      %v1240 = vand.u32 %v975, 4294901760
      %v1241 = vsub.f32 %v975, %v1240
      %v1242 = vand.u32 %v1241, 4294901760
      %v1243 = vsub.f32 %v1241, %v1242
      %v1244 = vand.u32 %v1243, 4294901760
      %1245 = vmatpush.msra.mxu0 %v1244
      %v1246 = vand.u32 %v981, 4294901760
      %1247 = vmatmul.f32.gmra.mxu0 %v1246
      %v1248 = vpop.f32.mrf.mxu0
      %v1249 = vadd.f32 %v1210, %v1248
      %v1250 = vand.u32 %v984, 4294901760
      %1251 = vmatmul.f32.gmra.mxu0 %v1250
      %v1252 = vpop.f32.mrf.mxu0
      %v1253 = vadd.f32 %v1218, %v1252
      %1254 = vdwg.mxu0
      %1255 = vmatpush.msra.mxu0 0.0
      %1256 = vmatpush.msra.mxu0 0.0
      %1257 = vmatpush.msra.mxu0 0.0
      %1258 = vmatpush.msra.mxu0 0.0
      %1259 = vmatpush.msra.mxu0 0.0
      %1260 = vmatpush.msra.mxu0 0.0
      %1261 = vmatpush.msra.mxu0 0.0
      %1262 = vmatpush.msra.mxu0 0.0
      %1263 = vmatpush.msra.mxu0 0.0
      %1264 = vmatpush.msra.mxu0 0.0
      %1265 = vmatpush.msra.mxu0 0.0
      %1266 = vmatpush.msra.mxu0 0.0
      %1267 = vmatpush.msra.mxu0 0.0
      %1268 = vmatpush.msra.mxu0 0.0
      %v1269 = vand.u32 %v990, 4294901760
      %v1270 = vsub.f32 %v990, %v1269
      %1271 = vmatpush.msra.mxu0 %v1270
      %v1272 = vand.u32 %v975, 4294901760
      %v1273 = vsub.f32 %v975, %v1272
      %1274 = vmatpush.msra.mxu0 %v1273
      %v1275 = vand.u32 %v981, 4294901760
      %v1276 = vsub.f32 %v981, %v1275
      %1277 = vmatmul.f32.gmra.mxu0 %v1276
      %v1278 = vpop.f32.mrf.mxu0
      %v1279 = vadd.f32 %v1249, %v1278
      %v1280 = vand.u32 %v984, 4294901760
      %v1281 = vsub.f32 %v984, %v1280
      %1282 = vmatmul.f32.gmra.mxu0 %v1281
      %v1283 = vpop.f32.mrf.mxu0
      %v1284 = vadd.f32 %v1253, %v1283
      %1285 = vdwg.mxu0
      %1286 = vmatpush.msra.mxu0 0.0
      %1287 = vmatpush.msra.mxu0 0.0
      %1288 = vmatpush.msra.mxu0 0.0
      %1289 = vmatpush.msra.mxu0 0.0
      %1290 = vmatpush.msra.mxu0 0.0
      %1291 = vmatpush.msra.mxu0 0.0
      %1292 = vmatpush.msra.mxu0 0.0
      %1293 = vmatpush.msra.mxu0 0.0
      %1294 = vmatpush.msra.mxu0 0.0
      %1295 = vmatpush.msra.mxu0 0.0
      %1296 = vmatpush.msra.mxu0 0.0
      %1297 = vmatpush.msra.mxu0 0.0
      %1298 = vmatpush.msra.mxu0 0.0
      %1299 = vmatpush.msra.mxu0 0.0
      %v1300 = vand.u32 %v990, 4294901760
      %1301 = vmatpush.msra.mxu0 %v1300
      %v1302 = vand.u32 %v975, 4294901760
      %1303 = vmatpush.msra.mxu0 %v1302
      %v1304 = vand.u32 %v981, 4294901760
      %v1305 = vsub.f32 %v981, %v1304
      %v1306 = vand.u32 %v1305, 4294901760
      %1307 = vmatmul.f32.gmra.mxu0 %v1306
      %v1308 = vpop.f32.mrf.mxu0
      %v1309 = vadd.f32 %v1279, %v1308
      %v1310 = vand.u32 %v984, 4294901760
      %v1311 = vsub.f32 %v984, %v1310
      %v1312 = vand.u32 %v1311, 4294901760
      %1313 = vmatmul.f32.gmra.mxu0 %v1312
      %v1314 = vpop.f32.mrf.mxu0
      %v1315 = vadd.f32 %v1284, %v1314
      %1316 = vdwg.mxu0
      %1317 = vmatpush.msra.mxu0 0.0
      %1318 = vmatpush.msra.mxu0 0.0
      %1319 = vmatpush.msra.mxu0 0.0
      %1320 = vmatpush.msra.mxu0 0.0
      %1321 = vmatpush.msra.mxu0 0.0
      %1322 = vmatpush.msra.mxu0 0.0
      %1323 = vmatpush.msra.mxu0 0.0
      %1324 = vmatpush.msra.mxu0 0.0
      %1325 = vmatpush.msra.mxu0 0.0
      %1326 = vmatpush.msra.mxu0 0.0
      %1327 = vmatpush.msra.mxu0 0.0
      %1328 = vmatpush.msra.mxu0 0.0
      %1329 = vmatpush.msra.mxu0 0.0
      %1330 = vmatpush.msra.mxu0 0.0
      %v1331 = vand.u32 %v990, 4294901760
      %v1332 = vsub.f32 %v990, %v1331
      %v1333 = vand.u32 %v1332, 4294901760
      %1334 = vmatpush.msra.mxu0 %v1333
      %v1335 = vand.u32 %v975, 4294901760
      %v1336 = vsub.f32 %v975, %v1335
      %v1337 = vand.u32 %v1336, 4294901760
      %1338 = vmatpush.msra.mxu0 %v1337
      %v1339 = vand.u32 %v981, 4294901760
      %1340 = vmatmul.f32.gmra.mxu0 %v1339
      %v1341 = vpop.f32.mrf.mxu0
      %v1342 = vadd.f32 %v1309, %v1341
      %v1343 = vand.u32 %v984, 4294901760
      %1344 = vmatmul.f32.gmra.mxu0 %v1343
      %v1345 = vpop.f32.mrf.mxu0
      %v1346 = vadd.f32 %v1315, %v1345
      %1347 = vdwg.mxu0
      %1348 = vmatpush.msra.mxu0 0.0
      %1349 = vmatpush.msra.mxu0 0.0
      %1350 = vmatpush.msra.mxu0 0.0
      %1351 = vmatpush.msra.mxu0 0.0
      %1352 = vmatpush.msra.mxu0 0.0
      %1353 = vmatpush.msra.mxu0 0.0
      %1354 = vmatpush.msra.mxu0 0.0
      %1355 = vmatpush.msra.mxu0 0.0
      %1356 = vmatpush.msra.mxu0 0.0
      %1357 = vmatpush.msra.mxu0 0.0
      %1358 = vmatpush.msra.mxu0 0.0
      %1359 = vmatpush.msra.mxu0 0.0
      %1360 = vmatpush.msra.mxu0 0.0
      %1361 = vmatpush.msra.mxu0 0.0
      %v1362 = vand.u32 %v990, 4294901760
      %1363 = vmatpush.msra.mxu0 %v1362
      %v1364 = vand.u32 %v975, 4294901760
      %1365 = vmatpush.msra.mxu0 %v1364
      %v1366 = vand.u32 %v981, 4294901760
      %1367 = vmatmul.f32.gmra.mxu0 %v1366
      %v1368 = vpop.f32.mrf.mxu0
      %v1369 = vadd.f32 %v1342, %v1368
      %v1370 = vand.u32 %v984, 4294901760
      %1371 = vmatmul.f32.gmra.mxu0 %v1370
      %v1372 = vpop.f32.mrf.mxu0
      %v1373 = vadd.f32 %v1346, %v1372
      %1374 = vdwg.mxu0
      %1375 = vmatpush.msra.mxu0 0.0
      %1376 = vmatpush.msra.mxu0 0.0
      %1377 = vmatpush.msra.mxu0 0.0
      %1378 = vmatpush.msra.mxu0 0.0
      %1379 = vmatpush.msra.mxu0 0.0
      %1380 = vmatpush.msra.mxu0 0.0
      %1381 = vmatpush.msra.mxu0 0.0
      %1382 = vmatpush.msra.mxu0 0.0
      %1383 = vmatpush.msra.mxu0 0.0
      %1384 = vmatpush.msra.mxu0 0.0
      %1385 = vmatpush.msra.mxu0 0.0
      %1386 = vmatpush.msra.mxu0 0.0
      %1387 = vmatpush.msra.mxu0 0.0
      %1388 = vmatpush.msra.mxu0 0.0
      %v1389 = vand.u32 %v993, 4294901760
      %1390 = vmatpush.msra.mxu0 %v1389
      %v1391 = vand.u32 %v976, 4294901760
      %1392 = vmatpush.msra.mxu0 %v1391
      %v1393 = vand.u32 %v981, 4294901760
      %v1394 = vsub.f32 %v981, %v1393
      %v1395 = vand.u32 %v1394, 4294901760
      %v1396 = vsub.f32 %v1394, %v1395
      %v1397 = vand.u32 %v1396, 4294901760
      %1398 = vmatmul.f32.gmra.mxu0 %v1397
      %v1399 = vpop.f32.mrf.mxu0
      %v1400 = vadd.f32 0.0, %v1399
      %v1401 = vand.u32 %v984, 4294901760
      %v1402 = vsub.f32 %v984, %v1401
      %v1403 = vand.u32 %v1402, 4294901760
      %v1404 = vsub.f32 %v1402, %v1403
      %v1405 = vand.u32 %v1404, 4294901760
      %1406 = vmatmul.f32.gmra.mxu0 %v1405
      %v1407 = vpop.f32.mrf.mxu0
      %v1408 = vadd.f32 0.0, %v1407
      %1409 = vdwg.mxu0
      %1410 = vmatpush.msra.mxu0 0.0
      %1411 = vmatpush.msra.mxu0 0.0
      %1412 = vmatpush.msra.mxu0 0.0
      %1413 = vmatpush.msra.mxu0 0.0
      %1414 = vmatpush.msra.mxu0 0.0
      %1415 = vmatpush.msra.mxu0 0.0
      %1416 = vmatpush.msra.mxu0 0.0
      %1417 = vmatpush.msra.mxu0 0.0
      %1418 = vmatpush.msra.mxu0 0.0
      %1419 = vmatpush.msra.mxu0 0.0
      %1420 = vmatpush.msra.mxu0 0.0
      %1421 = vmatpush.msra.mxu0 0.0
      %1422 = vmatpush.msra.mxu0 0.0
      %1423 = vmatpush.msra.mxu0 0.0
      %v1424 = vand.u32 %v993, 4294901760
      %v1425 = vsub.f32 %v993, %v1424
      %v1426 = vand.u32 %v1425, 4294901760
      %v1427 = vsub.f32 %v1425, %v1426
      %v1428 = vand.u32 %v1427, 4294901760
      %1429 = vmatpush.msra.mxu0 %v1428
      %v1430 = vand.u32 %v976, 4294901760
      %v1431 = vsub.f32 %v976, %v1430
      %v1432 = vand.u32 %v1431, 4294901760
      %v1433 = vsub.f32 %v1431, %v1432
      %v1434 = vand.u32 %v1433, 4294901760
      %1435 = vmatpush.msra.mxu0 %v1434
      %v1436 = vand.u32 %v981, 4294901760
      %1437 = vmatmul.f32.gmra.mxu0 %v1436
      %v1438 = vpop.f32.mrf.mxu0
      %v1439 = vadd.f32 %v1400, %v1438
      %v1440 = vand.u32 %v984, 4294901760
      %1441 = vmatmul.f32.gmra.mxu0 %v1440
      %v1442 = vpop.f32.mrf.mxu0
      %v1443 = vadd.f32 %v1408, %v1442
      %1444 = vdwg.mxu0
      %1445 = vmatpush.msra.mxu0 0.0
      %1446 = vmatpush.msra.mxu0 0.0
      %1447 = vmatpush.msra.mxu0 0.0
      %1448 = vmatpush.msra.mxu0 0.0
      %1449 = vmatpush.msra.mxu0 0.0
      %1450 = vmatpush.msra.mxu0 0.0
      %1451 = vmatpush.msra.mxu0 0.0
      %1452 = vmatpush.msra.mxu0 0.0
      %1453 = vmatpush.msra.mxu0 0.0
      %1454 = vmatpush.msra.mxu0 0.0
      %1455 = vmatpush.msra.mxu0 0.0
      %1456 = vmatpush.msra.mxu0 0.0
      %1457 = vmatpush.msra.mxu0 0.0
      %1458 = vmatpush.msra.mxu0 0.0
      %v1459 = vand.u32 %v993, 4294901760
      %v1460 = vsub.f32 %v993, %v1459
      %1461 = vmatpush.msra.mxu0 %v1460
      %v1462 = vand.u32 %v976, 4294901760
      %v1463 = vsub.f32 %v976, %v1462
      %1464 = vmatpush.msra.mxu0 %v1463
      %v1465 = vand.u32 %v981, 4294901760
      %v1466 = vsub.f32 %v981, %v1465
      %1467 = vmatmul.f32.gmra.mxu0 %v1466
      %v1468 = vpop.f32.mrf.mxu0
      %v1469 = vadd.f32 %v1439, %v1468
      %v1470 = vand.u32 %v984, 4294901760
      %v1471 = vsub.f32 %v984, %v1470
      %1472 = vmatmul.f32.gmra.mxu0 %v1471
      %v1473 = vpop.f32.mrf.mxu0
      %v1474 = vadd.f32 %v1443, %v1473
      %1475 = vdwg.mxu0
      %1476 = vmatpush.msra.mxu0 0.0
      %1477 = vmatpush.msra.mxu0 0.0
      %1478 = vmatpush.msra.mxu0 0.0
      %1479 = vmatpush.msra.mxu0 0.0
      %1480 = vmatpush.msra.mxu0 0.0
      %1481 = vmatpush.msra.mxu0 0.0
      %1482 = vmatpush.msra.mxu0 0.0
      %1483 = vmatpush.msra.mxu0 0.0
      %1484 = vmatpush.msra.mxu0 0.0
      %1485 = vmatpush.msra.mxu0 0.0
      %1486 = vmatpush.msra.mxu0 0.0
      %1487 = vmatpush.msra.mxu0 0.0
      %1488 = vmatpush.msra.mxu0 0.0
      %1489 = vmatpush.msra.mxu0 0.0
      %v1490 = vand.u32 %v993, 4294901760
      %1491 = vmatpush.msra.mxu0 %v1490
      %v1492 = vand.u32 %v976, 4294901760
      %1493 = vmatpush.msra.mxu0 %v1492
      %v1494 = vand.u32 %v981, 4294901760
      %v1495 = vsub.f32 %v981, %v1494
      %v1496 = vand.u32 %v1495, 4294901760
      %1497 = vmatmul.f32.gmra.mxu0 %v1496
      %v1498 = vpop.f32.mrf.mxu0
      %v1499 = vadd.f32 %v1469, %v1498
      %v1500 = vand.u32 %v984, 4294901760
      %v1501 = vsub.f32 %v984, %v1500
      %v1502 = vand.u32 %v1501, 4294901760
      %1503 = vmatmul.f32.gmra.mxu0 %v1502
      %v1504 = vpop.f32.mrf.mxu0
      %v1505 = vadd.f32 %v1474, %v1504
      %1506 = vdwg.mxu0
      %1507 = vmatpush.msra.mxu0 0.0
      %1508 = vmatpush.msra.mxu0 0.0
      %1509 = vmatpush.msra.mxu0 0.0
      %1510 = vmatpush.msra.mxu0 0.0
      %1511 = vmatpush.msra.mxu0 0.0
      %1512 = vmatpush.msra.mxu0 0.0
      %1513 = vmatpush.msra.mxu0 0.0
      %1514 = vmatpush.msra.mxu0 0.0
      %1515 = vmatpush.msra.mxu0 0.0
      %1516 = vmatpush.msra.mxu0 0.0
      %1517 = vmatpush.msra.mxu0 0.0
      %1518 = vmatpush.msra.mxu0 0.0
      %1519 = vmatpush.msra.mxu0 0.0
      %1520 = vmatpush.msra.mxu0 0.0
      %v1521 = vand.u32 %v993, 4294901760
      %v1522 = vsub.f32 %v993, %v1521
      %v1523 = vand.u32 %v1522, 4294901760
      %1524 = vmatpush.msra.mxu0 %v1523
      %v1525 = vand.u32 %v976, 4294901760
      %v1526 = vsub.f32 %v976, %v1525
      %v1527 = vand.u32 %v1526, 4294901760
      %1528 = vmatpush.msra.mxu0 %v1527
      %v1529 = vand.u32 %v981, 4294901760
      %1530 = vmatmul.f32.gmra.mxu0 %v1529
      %v1531 = vpop.f32.mrf.mxu0
      %v1532 = vadd.f32 %v1499, %v1531
      %v1533 = vand.u32 %v984, 4294901760
      %1534 = vmatmul.f32.gmra.mxu0 %v1533
      %v1535 = vpop.f32.mrf.mxu0
      %v1536 = vadd.f32 %v1505, %v1535
      %1537 = vdwg.mxu0
      %1538 = vmatpush.msra.mxu0 0.0
      %1539 = vmatpush.msra.mxu0 0.0
      %1540 = vmatpush.msra.mxu0 0.0
      %1541 = vmatpush.msra.mxu0 0.0
      %1542 = vmatpush.msra.mxu0 0.0
      %1543 = vmatpush.msra.mxu0 0.0
      %1544 = vmatpush.msra.mxu0 0.0
      %1545 = vmatpush.msra.mxu0 0.0
      %1546 = vmatpush.msra.mxu0 0.0
      %1547 = vmatpush.msra.mxu0 0.0
      %1548 = vmatpush.msra.mxu0 0.0
      %1549 = vmatpush.msra.mxu0 0.0
      %1550 = vmatpush.msra.mxu0 0.0
      %1551 = vmatpush.msra.mxu0 0.0
      %v1552 = vand.u32 %v993, 4294901760
      %1553 = vmatpush.msra.mxu0 %v1552
      %v1554 = vand.u32 %v976, 4294901760
      %1555 = vmatpush.msra.mxu0 %v1554
      %v1556 = vand.u32 %v981, 4294901760
      %1557 = vmatmul.f32.gmra.mxu0 %v1556
      %v1558 = vpop.f32.mrf.mxu0
      %v1559 = vadd.f32 %v1532, %v1558
      %v1560 = vand.u32 %v984, 4294901760
      %1561 = vmatmul.f32.gmra.mxu0 %v1560
      %v1562 = vpop.f32.mrf.mxu0
      %v1563 = vadd.f32 %v1536, %v1562
      %1564 = vdwg.mxu0
      %v1565 = vmul.f32 %v456, %v464
      %v1566 = vmul.f32 %v708, %v716
      %v1567 = vmul.f32 %v960, %v968
      %v1568 = vmul.f32 %v460, %v468
      %v1569 = vmul.f32 %v712, %v720
      %v1570 = vmul.f32 %v964, %v972
      %v1571 = vadd.f32 %v1565, %v1179
      %v1572 = vadd.f32 %v1566, %v1369
      %v1573 = vadd.f32 %v1567, %v1559
      %v1574 = vadd.f32 %v1568, %v1183
      %v1575 = vadd.f32 %v1569, %v1373
      %v1576 = vadd.f32 %v1570, %v1563
      %1577 = vst [vmem:[%s181] sm:$0xff] %v1571
      %1578 = vst [vmem:[%s181 + $0x8] sm:$0xff] %v1572
      %1579 = vst [vmem:[%s181 + $0x10] sm:$0xff] %v1573
      %1580 = vst [vmem:[%s181 + $0x18] sm:$0xff] %v1574
      %1581 = vst [vmem:[%s181 + $0x20] sm:$0xff] %v1575
      %1582 = vst [vmem:[%s181 + $0x28] sm:$0xff] %v1576
      %s1583 = smul.u32 3, %s18
      %p1584 = scmp.lt.s32.totalorder %s17, 1
      %s1585 = scalar_select %p1584, %s17, 1
      %p1586 = scmp.lt.s32.totalorder %s1583, 2
      %s1587 = scalar_select %p1586, %s1583, 2
      %s1588 = smul.addr %s1585, 6
      %s1589 = sadd.s32 %s1587, %s1588
      %s1590 = smul.addr %s1589, 8
      %s1591 = scalar_lea.vmem %s2, %s1590
      // Predicated region
      $region29: #{quad_deconv.1} parent=27 // pred_check
        %p1592 = pneg %p94
      $region30: #{quad_deconv.1} parent=27 // pred_check_branch
        %1594 = sbr.rel (%p1592) target = $region32
      $region31: #{quad_deconv.1} parent=27 // pred_region
        %s1595 = smul.u32 3, %s18
      $region32: #{quad_deconv.1} parent=27 // pred_fallthru
        _
    $region28: #{quad_deconv.1} parent=5 // pred_fallthru
      _
    %p1596 = scmp.le.s32.totalorder 2, %s8
    // Predicated region
    $region33: #{quad_deconv.1} parent=5 // pred_check
      %p1597 = pneg %p1596
    $region34: #{quad_deconv.1} parent=5 // pred_check_branch
      %1599 = sbr.rel (%p1597) target = $region36
    $region35: #{quad_deconv.1} parent=5 // pred_region
      %s1600 = ssub.s32 %s8, 2
      // Predicated region
      $region37: #{quad_deconv.1} parent=35 // pred_check
        %p1601 = pneg %p100
      $region38: #{quad_deconv.1} parent=35 // pred_check_branch
        %1603 = sbr.rel (%p1601) target = $region40
      $region39: #{quad_deconv.1} parent=35 // pred_region
        %s1604 = smul.u32 3, %s20
        %p1605 = scmp.lt.s32.totalorder %s19, 1
        %s1606 = scalar_select %p1605, %s19, 1
        %p1607 = scmp.lt.s32.totalorder %s1604, 2
        %s1608 = scalar_select %p1607, %s1604, 2
        %s1609 = smul.addr %s1606, 6
        %s1610 = sadd.s32 %s1608, %s1609
        %s1611 = smul.addr %s1610, 8
        %s1612 = scalar_lea.vmem %s2, %s1611
      $region40: #{quad_deconv.1} parent=35 // pred_fallthru
        _
    $region36: #{quad_deconv.1} parent=5 // pred_fallthru
      _
  $region6: #{quad_deconv.1} parent=0 // loop_footer
    %s12 = sadd.s32 1, %s8
  $region7: #{quad_deconv.1} parent=0 // loop_footer_branch
    %7 = sbr.rel target = $region3
  $region8: #{quad_deconv.1} parent=0 // loop_exit
    _

</llo_original>
